<compile_context>
chip_gen: v6e
topology: v6e:2x2x1
jax: 0.10.0
libtpu: 0.0.40
codegen_flags: <defaults>
</compile_context>

<pallas_src>
import functools

import jax
import jax.numpy as jnp
import numpy as np
from jax.experimental import pallas as pl
from jax.experimental.pallas import tpu as pltpu


def _model_kernel(seqlen_ref,                         # scalar prefetch: (Bp,) int32 in SMEM
                  x_ref,                              # (TB, S, D)
                  wqkv_ref, bqkv_ref,                 # (D, 3D), (1, 3D)
                  w1_ref, b1_ref, w2_ref, b2_ref, w3_ref, b3_ref,
                  out_ref,                            # (TB, 2, 200)
                  *, tb):
    S = x_ref.shape[1]
    D = x_ref.shape[2]
    base = pl.program_id(0) * tb

    x_blk = x_ref[...]                                # (TB, S, D)

    # ---- fused Q/K/V projection: one MXU matmul per grid step ----
    x_flat = x_blk.reshape(tb * S, D)
    qkv = jnp.dot(x_flat, wqkv_ref[...], preferred_element_type=jnp.float32) + bqkv_ref[...]
    qkv = qkv.reshape(tb, S, 3 * D)
    q_all = qkv[:, :, 0:D]                            # (TB, S, D)
    k_all = qkv[:, :, D:2 * D]                        # (TB, S, D)
    v_all = qkv[:, :, 2 * D:3 * D]                    # (TB, S, D)

    # ---- per-row sequence lengths -> masks (SMEM scalars broadcast via selects) ----
    row = jax.lax.broadcasted_iota(jnp.int32, (tb, S), 0)
    pos = jax.lax.broadcasted_iota(jnp.int32, (tb, S), 1)
    sl = jnp.zeros((tb, S), jnp.int32)
    for t in range(tb):                               # tb is small & static
        sl = jnp.where(row == t, seqlen_ref[base + t], sl)
    last = sl - 1
    valid = pos < last                                # keys/values: positions 0 .. sl-2
    sel = (pos == last).astype(jnp.float32)           # one-hot query position sl-1

    # query row per batch element (exact: one-hot dot)
    q = jnp.sum(q_all * sel[:, :, None], axis=1)      # (TB, D)

    # scores[t, s] = q[t] . k[t, s]   (VPU mul + lane reduce; no k transpose)
    scores = jnp.sum(q[:, None, :] * k_all, axis=-1)  # (TB, S)

    # masked softmax over the valid prefix
    masked = jnp.where(valid, scores, -jnp.inf)
    m = jnp.max(masked, axis=-1, keepdims=True)
    e = jnp.where(valid, jnp.exp(masked - m), 0.0)
    probs = e / jnp.sum(e, axis=-1, keepdims=True)
    # TODO(synk): sl == 1 (no previous items) is an empty softmax in PyTorch; assumed sl >= 2.

    attn = jnp.sum(probs[:, :, None] * v_all, axis=1)  # (TB, D)
    prev = jnp.tanh(attn)
    # dropout(p=0.5): identity (inference semantics).

    # ---- next-item branch: input[:, -1, :] ----
    nxt = x_blk[:, S - 1, :]                           # (TB, D)

    # ---- shared MLP head, one pass over the stacked (2*TB, D) matrix ----
    h = jnp.concatenate([prev, nxt], axis=0)           # (2*TB, D)
    h = jnp.maximum(jnp.dot(h, w1_ref[...], preferred_element_type=jnp.float32) + b1_ref[...], 0.0)
    h = jnp.maximum(jnp.dot(h, w2_ref[...], preferred_element_type=jnp.float32) + b2_ref[...], 0.0)
    h = jnp.maximum(jnp.dot(h, w3_ref[...], preferred_element_type=jnp.float32) + b3_ref[...], 0.0)

    out_ref[:, 0, :] = h[:tb]                          # prev branch
    out_ref[:, 1, :] = h[tb:]                          # next branch


def model_forward(x, mask, params, *, tb=8):
    """x: (B, S, D) f32, mask: (B, S) int32. Returns (B, 2, 200) f32."""
    B, S, D = x.shape
    (wq, bq), (wk, bk), (wv, bv), (w1, b1), (w2, b2), (w3, b3) = params
    out_dim = w3.shape[0]

    seq_len = jnp.sum(mask, axis=1).astype(jnp.int32)          # torch.sum(mask, dim=1)

    # Fuse the three projections into one (D, 3D) weight; pre-transpose all weights
    # from PyTorch (out, in) to (in, out) so the kernel does plain x @ Wt.
    w_qkv = jnp.concatenate([wq.T, wk.T, wv.T], axis=1)        # (D, 3D)
    b_qkv = jnp.concatenate([bq, bk, bv], axis=1)              # (1, 3D)
    w1t, w2t, w3t = w1.T, w2.T, w3.T

    # Pad batch to a multiple of the batch tile.
    Bp = ((B + tb - 1) // tb) * tb
    if Bp != B:
        x = jnp.pad(x, ((0, Bp - B), (0, 0), (0, 0)))
        seq_len = jnp.pad(seq_len, (0, Bp - B), constant_values=S)   # keep softmax well-defined

    full = lambda a: pl.BlockSpec(a.shape, lambda b, sl: (0, 0))

    grid_spec = pltpu.PrefetchScalarGridSpec(
        num_scalar_prefetch=1,
        grid=(Bp // tb,),
        in_specs=[
            pl.BlockSpec((tb, S, D), lambda b, sl: (b, 0, 0)),
            full(w_qkv), full(b_qkv),
            full(w1t), full(b1), full(w2t), full(b2), full(w3t), full(b3),
        ],
        out_specs=pl.BlockSpec((tb, 2, out_dim), lambda b, sl: (b, 0, 0)),
    )

    kernel = functools.partial(_model_kernel, tb=tb)

    out = pl.pallas_call(
        kernel,
        out_shape=jax.ShapeDtypeStruct((Bp, 2, out_dim), jnp.float32),
        grid_spec=grid_spec,
        compiler_params=pltpu.CompilerParams(dimension_semantics=("parallel",)),
    )(seq_len, x, w_qkv, b_qkv, w1t, b1, w2t, b2, w3t, b3)
    return out[:B]


def init_params(key, input_dim, final_dim=200):
    """Deterministic PyTorch-Linear-style init. Weights in (out, in) convention."""
    def linear(kw, kb, out_f, in_f):
        bound = 1.0 / np.sqrt(in_f)
        w = jax.random.uniform(kw, (out_f, in_f), jnp.float32, -bound, bound)
        b = jax.random.uniform(kb, (1, out_f), jnp.float32, -bound, bound)
        return w, b

    ks = jax.random.split(key, 12)
    wq = linear(ks[0],  ks[1],  input_dim,       input_dim)
    wk = linear(ks[2],  ks[3],  input_dim,       input_dim)
    wv = linear(ks[4],  ks[5],  input_dim,       input_dim)
    f1 = linear(ks[6],  ks[7],  input_dim // 2,  input_dim)
    f2 = linear(ks[8],  ks[9],  input_dim // 4,  input_dim // 2)
    f3 = linear(ks[10], ks[11], final_dim,       input_dim // 4)
    return (wq, wk, wv, f1, f2, f3)


def reference_forward(x, mask, params):
    """Pure-JAX replica of the PyTorch forward (eval mode) for validation."""
    (wq, bq), (wk, bk), (wv, bv), (w1, b1), (w2, b2), (w3, b3) = params
    B = x.shape[0]
    seq_len = np.asarray(jnp.sum(mask, axis=1))
    prevs = []
    for i in range(B):
        sl = int(seq_len[i])
        q = x[i, sl - 1:sl, :] @ wq.T + bq
        k = x[i, :sl - 1, :] @ wk.T + bk
        v = x[i, :sl - 1, :] @ wv.T + bv
        p = jax.nn.softmax(q @ k.T, axis=-1)
        prevs.append(jnp.tanh(p @ v))
    prev = jnp.concatenate(prevs, axis=0)
    nxt = x[:, -1, :]

    def mlp(h):
        h = jnp.maximum(h @ w1.T + b1, 0.0)
        h = jnp.maximum(h @ w2.T + b2, 0.0)
        h = jnp.maximum(h @ w3.T + b3, 0.0)
        return h

    out = jnp.concatenate([mlp(prev), mlp(nxt)], axis=1)
    return out.reshape(B, 2, w3.shape[0])


if __name__ == "__main__":
    B, S, D = 12, 8, 32
    key = jax.random.PRNGKey(0)
    k_x, k_p = jax.random.split(key)

    x = jax.random.normal(k_x, (B, S, D), dtype=jnp.float32)

    # prefix masks with varying valid lengths (all >= 2)
    seq_lens = np.array([5, 8, 2, 7, 3, 6, 4, 8, 2, 5, 7, 3], dtype=np.int32)
    mask = jnp.asarray((np.arange(S)[None, :] < seq_lens[:, None]).astype(np.int32))

    params = init_params(k_p, D)

    out = model_forward(x, mask, params, tb=8)   # B=12 padded to 16 -> grid of 2 steps
    out = jax.block_until_ready(out)

    ref = reference_forward(x, mask, params)
    np.testing.assert_allclose(np.asarray(out), np.asarray(ref), rtol=1e-4, atol=1e-4)
    assert out.shape == (B, 2, 200)
    print("KERNEL_OK")
</pallas_src>

<mosaic_0001>
module attributes {stable_mosaic.version = 11 : i64} {
  func.func @_model_kernel(%arg0: i32, %arg1: memref<16xi32, #tpu.memory_space<smem>>, %arg2: memref<8x8x32xf32, #tpu.memory_space<vmem>>, %arg3: memref<32x96xf32, #tpu.memory_space<vmem>>, %arg4: memref<1x96xf32, #tpu.memory_space<vmem>>, %arg5: memref<32x16xf32, #tpu.memory_space<vmem>>, %arg6: memref<1x16xf32, #tpu.memory_space<vmem>>, %arg7: memref<16x8xf32, #tpu.memory_space<vmem>>, %arg8: memref<1x8xf32, #tpu.memory_space<vmem>>, %arg9: memref<8x200xf32, #tpu.memory_space<vmem>>, %arg10: memref<1x200xf32, #tpu.memory_space<vmem>>, %arg11: memref<8x2x200xf32, #tpu.memory_space<vmem>>) attributes {dimension_semantics = [#tpu.dimension_semantics<parallel>], iteration_bounds = array<i64: 2>, scalar_prefetch = 1 : i64, scratch_operands = 0 : i64, tpu.core_type = #tpu.core_type<tc>, window_params = [{transform_indices = @transform_0, window_bounds = array<i64: 8, 8, 32>}, {pipeline_mode = #tpu.pipeline_mode<synchronous>, transform_indices = @transform_1, window_bounds = array<i64: 32, 96>}, {pipeline_mode = #tpu.pipeline_mode<synchronous>, transform_indices = @transform_2, window_bounds = array<i64: 1, 96>}, {pipeline_mode = #tpu.pipeline_mode<synchronous>, transform_indices = @transform_3, window_bounds = array<i64: 32, 16>}, {pipeline_mode = #tpu.pipeline_mode<synchronous>, transform_indices = @transform_4, window_bounds = array<i64: 1, 16>}, {pipeline_mode = #tpu.pipeline_mode<synchronous>, transform_indices = @transform_5, window_bounds = array<i64: 16, 8>}, {pipeline_mode = #tpu.pipeline_mode<synchronous>, transform_indices = @transform_6, window_bounds = array<i64: 1, 8>}, {pipeline_mode = #tpu.pipeline_mode<synchronous>, transform_indices = @transform_7, window_bounds = array<i64: 8, 200>}, {pipeline_mode = #tpu.pipeline_mode<synchronous>, transform_indices = @transform_8, window_bounds = array<i64: 1, 200>}, {transform_indices = @transform_9, window_bounds = array<i64: 8, 2, 200>}]} {
    %c8_i32 = arith.constant 8 : i32
    %0 = arith.muli %arg0, %c8_i32 : i32
    %c0 = arith.constant 0 : index
    %c0_0 = arith.constant 0 : index
    %c0_1 = arith.constant 0 : index
    %1 = vector.load %arg2[%c0, %c0_0, %c0_1] : memref<8x8x32xf32, #tpu.memory_space<vmem>>, vector<8x8x32xf32>
    %2 = vector.shape_cast %1 : vector<8x8x32xf32> to vector<64x32xf32>
    %c0_2 = arith.constant 0 : index
    %c0_3 = arith.constant 0 : index
    %3 = vector.load %arg3[%c0_2, %c0_3] : memref<32x96xf32, #tpu.memory_space<vmem>>, vector<32x96xf32>
    %cst = arith.constant dense<0.000000e+00> : vector<64x96xf32>
    %4 = tpu.matmul %2, %3, %cst {dimension_numbers = #tpu.dot_dimension_numbers<[1], [0], [0], [1], [0, 0, 1, 1], [], []>} : vector<64x32xf32>, vector<32x96xf32>, vector<64x96xf32> -> vector<64x96xf32>
    %c0_4 = arith.constant 0 : index
    %c0_5 = arith.constant 0 : index
    %5 = vector.load %arg4[%c0_4, %c0_5] : memref<1x96xf32, #tpu.memory_space<vmem>>, vector<1x96xf32>
    %6 = vector.broadcast %5 : vector<1x96xf32> to vector<64x96xf32>
    %7 = arith.addf %4, %6 : vector<64x96xf32>
    %8 = vector.shape_cast %7 : vector<64x96xf32> to vector<8x8x96xf32>
    %9 = vector.extract_strided_slice %8 {offsets = [0, 0, 0], sizes = [8, 8, 32], strides = [1, 1, 1]} : vector<8x8x96xf32> to vector<8x8x32xf32>
    %10 = vector.extract_strided_slice %8 {offsets = [0, 0, 32], sizes = [8, 8, 32], strides = [1, 1, 1]} : vector<8x8x96xf32> to vector<8x8x32xf32>
    %11 = vector.extract_strided_slice %8 {offsets = [0, 0, 64], sizes = [8, 8, 32], strides = [1, 1, 1]} : vector<8x8x96xf32> to vector<8x8x32xf32>
    %12 = tpu.iota {dimensions = array<i32: 0>} : vector<8x8xi32>
    %13 = tpu.iota {dimensions = array<i32: 1>} : vector<8x8xi32>
    %c0_i32 = arith.constant 0 : i32
    %14 = vector.broadcast %c0_i32 : i32 to vector<8x8xi32>
    %c0_i32_6 = arith.constant 0 : i32
    %15 = vector.broadcast %c0_i32_6 : i32 to vector<8x8xi32>
    %16 = arith.cmpi eq, %12, %15 : vector<8x8xi32>
    %c0_i32_7 = arith.constant 0 : i32
    %17 = arith.addi %0, %c0_i32_7 : i32
    %18 = arith.index_cast %17 : i32 to index
    %19 = memref.load %arg1[%18] : memref<16xi32, #tpu.memory_space<smem>>
    %20 = vector.broadcast %19 : i32 to vector<8x8xi32>
    %21 = arith.select %16, %20, %14 : vector<8x8xi1>, vector<8x8xi32>
    %c1_i32 = arith.constant 1 : i32
    %22 = vector.broadcast %c1_i32 : i32 to vector<8x8xi32>
    %23 = arith.cmpi eq, %12, %22 : vector<8x8xi32>
    %c1_i32_8 = arith.constant 1 : i32
    %24 = arith.addi %0, %c1_i32_8 : i32
    %25 = arith.index_cast %24 : i32 to index
    %26 = memref.load %arg1[%25] : memref<16xi32, #tpu.memory_space<smem>>
    %27 = vector.broadcast %26 : i32 to vector<8x8xi32>
    %28 = arith.select %23, %27, %21 : vector<8x8xi1>, vector<8x8xi32>
    %c2_i32 = arith.constant 2 : i32
    %29 = vector.broadcast %c2_i32 : i32 to vector<8x8xi32>
    %30 = arith.cmpi eq, %12, %29 : vector<8x8xi32>
    %c2_i32_9 = arith.constant 2 : i32
    %31 = arith.addi %0, %c2_i32_9 : i32
    %32 = arith.index_cast %31 : i32 to index
    %33 = memref.load %arg1[%32] : memref<16xi32, #tpu.memory_space<smem>>
    %34 = vector.broadcast %33 : i32 to vector<8x8xi32>
    %35 = arith.select %30, %34, %28 : vector<8x8xi1>, vector<8x8xi32>
    %c3_i32 = arith.constant 3 : i32
    %36 = vector.broadcast %c3_i32 : i32 to vector<8x8xi32>
    %37 = arith.cmpi eq, %12, %36 : vector<8x8xi32>
    %c3_i32_10 = arith.constant 3 : i32
    %38 = arith.addi %0, %c3_i32_10 : i32
    %39 = arith.index_cast %38 : i32 to index
    %40 = memref.load %arg1[%39] : memref<16xi32, #tpu.memory_space<smem>>
    %41 = vector.broadcast %40 : i32 to vector<8x8xi32>
    %42 = arith.select %37, %41, %35 : vector<8x8xi1>, vector<8x8xi32>
    %c4_i32 = arith.constant 4 : i32
    %43 = vector.broadcast %c4_i32 : i32 to vector<8x8xi32>
    %44 = arith.cmpi eq, %12, %43 : vector<8x8xi32>
    %c4_i32_11 = arith.constant 4 : i32
    %45 = arith.addi %0, %c4_i32_11 : i32
    %46 = arith.index_cast %45 : i32 to index
    %47 = memref.load %arg1[%46] : memref<16xi32, #tpu.memory_space<smem>>
    %48 = vector.broadcast %47 : i32 to vector<8x8xi32>
    %49 = arith.select %44, %48, %42 : vector<8x8xi1>, vector<8x8xi32>
    %c5_i32 = arith.constant 5 : i32
    %50 = vector.broadcast %c5_i32 : i32 to vector<8x8xi32>
    %51 = arith.cmpi eq, %12, %50 : vector<8x8xi32>
    %c5_i32_12 = arith.constant 5 : i32
    %52 = arith.addi %0, %c5_i32_12 : i32
    %53 = arith.index_cast %52 : i32 to index
    %54 = memref.load %arg1[%53] : memref<16xi32, #tpu.memory_space<smem>>
    %55 = vector.broadcast %54 : i32 to vector<8x8xi32>
    %56 = arith.select %51, %55, %49 : vector<8x8xi1>, vector<8x8xi32>
    %c6_i32 = arith.constant 6 : i32
    %57 = vector.broadcast %c6_i32 : i32 to vector<8x8xi32>
    %58 = arith.cmpi eq, %12, %57 : vector<8x8xi32>
    %c6_i32_13 = arith.constant 6 : i32
    %59 = arith.addi %0, %c6_i32_13 : i32
    %60 = arith.index_cast %59 : i32 to index
    %61 = memref.load %arg1[%60] : memref<16xi32, #tpu.memory_space<smem>>
    %62 = vector.broadcast %61 : i32 to vector<8x8xi32>
    %63 = arith.select %58, %62, %56 : vector<8x8xi1>, vector<8x8xi32>
    %c7_i32 = arith.constant 7 : i32
    %64 = vector.broadcast %c7_i32 : i32 to vector<8x8xi32>
    %65 = arith.cmpi eq, %12, %64 : vector<8x8xi32>
    %c7_i32_14 = arith.constant 7 : i32
    %66 = arith.addi %0, %c7_i32_14 : i32
    %67 = arith.index_cast %66 : i32 to index
    %68 = memref.load %arg1[%67] : memref<16xi32, #tpu.memory_space<smem>>
    %69 = vector.broadcast %68 : i32 to vector<8x8xi32>
    %70 = arith.select %65, %69, %63 : vector<8x8xi1>, vector<8x8xi32>
    %c1_i32_15 = arith.constant 1 : i32
    %71 = vector.broadcast %c1_i32_15 : i32 to vector<8x8xi32>
    %72 = arith.subi %70, %71 : vector<8x8xi32>
    %73 = arith.cmpi slt, %13, %72 : vector<8x8xi32>
    %74 = arith.cmpi eq, %13, %72 : vector<8x8xi32>
    %75 = arith.extui %74 : vector<8x8xi1> to vector<8x8xi32>
    %76 = arith.sitofp %75 : vector<8x8xi32> to vector<8x8xf32>
    %77 = vector.shape_cast %76 : vector<8x8xf32> to vector<8x8x1xf32>
    %78 = vector.broadcast %77 : vector<8x8x1xf32> to vector<8x8x32xf32>
    %79 = arith.mulf %9, %78 : vector<8x8x32xf32>
    %cst_16 = arith.constant dense<0.000000e+00> : vector<8x32xf32>
    %80 = vector.multi_reduction <add>, %79, %cst_16 [1] : vector<8x8x32xf32> to vector<8x32xf32>
    %81 = vector.shape_cast %80 : vector<8x32xf32> to vector<8x1x32xf32>
    %82 = vector.broadcast %81 : vector<8x1x32xf32> to vector<8x8x32xf32>
    %83 = arith.mulf %82, %10 : vector<8x8x32xf32>
    %cst_17 = arith.constant dense<0.000000e+00> : vector<8x8xf32>
    %84 = vector.multi_reduction <add>, %83, %cst_17 [2] : vector<8x8x32xf32> to vector<8x8xf32>
    %cst_18 = arith.constant 0xFF800000 : f32
    %85 = vector.broadcast %cst_18 : f32 to vector<8x8xf32>
    %86 = arith.select %73, %84, %85 : vector<8x8xi1>, vector<8x8xf32>
    %cst_19 = arith.constant dense<0xFF800000> : vector<8xf32>
    %87 = vector.multi_reduction <maximumf>, %86, %cst_19 [1] : vector<8x8xf32> to vector<8xf32>
    %88 = vector.shape_cast %87 : vector<8xf32> to vector<8x1xf32>
    %89 = vector.broadcast %88 : vector<8x1xf32> to vector<8x8xf32>
    %90 = arith.subf %86, %89 : vector<8x8xf32>
    %91 = math.exp %90 : vector<8x8xf32>
    %cst_20 = arith.constant 0.000000e+00 : f32
    %92 = vector.broadcast %cst_20 : f32 to vector<8x8xf32>
    %93 = arith.select %73, %91, %92 : vector<8x8xi1>, vector<8x8xf32>
    %cst_21 = arith.constant dense<0.000000e+00> : vector<8xf32>
    %94 = vector.multi_reduction <add>, %93, %cst_21 [1] : vector<8x8xf32> to vector<8xf32>
    %95 = vector.shape_cast %94 : vector<8xf32> to vector<8x1xf32>
    %96 = vector.broadcast %95 : vector<8x1xf32> to vector<8x8xf32>
    %97 = arith.divf %93, %96 : vector<8x8xf32>
    %98 = vector.shape_cast %97 : vector<8x8xf32> to vector<8x8x1xf32>
    %99 = vector.broadcast %98 : vector<8x8x1xf32> to vector<8x8x32xf32>
    %100 = arith.mulf %99, %11 : vector<8x8x32xf32>
    %cst_22 = arith.constant dense<0.000000e+00> : vector<8x32xf32>
    %101 = vector.multi_reduction <add>, %100, %cst_22 [1] : vector<8x8x32xf32> to vector<8x32xf32>
    %102 = math.tanh %101 : vector<8x32xf32>
    %103 = vector.extract_strided_slice %1 {offsets = [0, 7, 0], sizes = [8, 1, 32], strides = [1, 1, 1]} : vector<8x8x32xf32> to vector<8x1x32xf32>
    %104 = vector.shape_cast %103 : vector<8x1x32xf32> to vector<8x32xf32>
    %105 = tpu.concatenate %102, %104 in 0 : vector<8x32xf32>, vector<8x32xf32> -> vector<16x32xf32>
    %c0_23 = arith.constant 0 : index
    %c0_24 = arith.constant 0 : index
    %106 = vector.load %arg5[%c0_23, %c0_24] : memref<32x16xf32, #tpu.memory_space<vmem>>, vector<32x16xf32>
    %cst_25 = arith.constant dense<0.000000e+00> : vector<16x16xf32>
    %107 = tpu.matmul %105, %106, %cst_25 {dimension_numbers = #tpu.dot_dimension_numbers<[1], [0], [0], [1], [0, 0, 1, 1], [], []>} : vector<16x32xf32>, vector<32x16xf32>, vector<16x16xf32> -> vector<16x16xf32>
    %c0_26 = arith.constant 0 : index
    %c0_27 = arith.constant 0 : index
    %108 = vector.load %arg6[%c0_26, %c0_27] : memref<1x16xf32, #tpu.memory_space<vmem>>, vector<1x16xf32>
    %109 = vector.broadcast %108 : vector<1x16xf32> to vector<16x16xf32>
    %110 = arith.addf %107, %109 : vector<16x16xf32>
    %cst_28 = arith.constant 0.000000e+00 : f32
    %111 = vector.broadcast %cst_28 : f32 to vector<16x16xf32>
    %112 = arith.maximumf %110, %111 : vector<16x16xf32>
    %c0_29 = arith.constant 0 : index
    %c0_30 = arith.constant 0 : index
    %113 = vector.load %arg7[%c0_29, %c0_30] : memref<16x8xf32, #tpu.memory_space<vmem>>, vector<16x8xf32>
    %cst_31 = arith.constant dense<0.000000e+00> : vector<16x8xf32>
    %114 = tpu.matmul %112, %113, %cst_31 {dimension_numbers = #tpu.dot_dimension_numbers<[1], [0], [0], [1], [0, 0, 1, 1], [], []>} : vector<16x16xf32>, vector<16x8xf32>, vector<16x8xf32> -> vector<16x8xf32>
    %c0_32 = arith.constant 0 : index
    %c0_33 = arith.constant 0 : index
    %115 = vector.load %arg8[%c0_32, %c0_33] : memref<1x8xf32, #tpu.memory_space<vmem>>, vector<1x8xf32>
    %116 = vector.broadcast %115 : vector<1x8xf32> to vector<16x8xf32>
    %117 = arith.addf %114, %116 : vector<16x8xf32>
    %cst_34 = arith.constant 0.000000e+00 : f32
    %118 = vector.broadcast %cst_34 : f32 to vector<16x8xf32>
    %119 = arith.maximumf %117, %118 : vector<16x8xf32>
    %c0_35 = arith.constant 0 : index
    %c0_36 = arith.constant 0 : index
    %120 = vector.load %arg9[%c0_35, %c0_36] : memref<8x200xf32, #tpu.memory_space<vmem>>, vector<8x200xf32>
    %cst_37 = arith.constant dense<0.000000e+00> : vector<16x200xf32>
    %121 = tpu.matmul %119, %120, %cst_37 {dimension_numbers = #tpu.dot_dimension_numbers<[1], [0], [0], [1], [0, 0, 1, 1], [], []>} : vector<16x8xf32>, vector<8x200xf32>, vector<16x200xf32> -> vector<16x200xf32>
    %c0_38 = arith.constant 0 : index
    %c0_39 = arith.constant 0 : index
    %122 = vector.load %arg10[%c0_38, %c0_39] : memref<1x200xf32, #tpu.memory_space<vmem>>, vector<1x200xf32>
    %123 = vector.broadcast %122 : vector<1x200xf32> to vector<16x200xf32>
    %124 = arith.addf %121, %123 : vector<16x200xf32>
    %cst_40 = arith.constant 0.000000e+00 : f32
    %125 = vector.broadcast %cst_40 : f32 to vector<16x200xf32>
    %126 = arith.maximumf %124, %125 : vector<16x200xf32>
    %127 = vector.extract_strided_slice %126 {offsets = [0, 0], sizes = [8, 200], strides = [1, 1]} : vector<16x200xf32> to vector<8x200xf32>
    %c0_41 = arith.constant 0 : index
    %c0_42 = arith.constant 0 : index
    %c0_43 = arith.constant 0 : index
    %128 = vector.load %arg11[%c0_41, %c0_42, %c0_43] : memref<8x2x200xf32, #tpu.memory_space<vmem>>, vector<8x1x200xf32>
    %129 = vector.shape_cast %128 : vector<8x1x200xf32> to vector<8x200xf32>
    %130 = vector.shape_cast %127 : vector<8x200xf32> to vector<8x1x200xf32>
    tpu.vector_store %arg11[%c0_41, %c0_42, %c0_43], %130 {strides = array<i32>} : memref<8x2x200xf32, #tpu.memory_space<vmem>>, vector<8x1x200xf32>,
    %131 = vector.extract_strided_slice %126 {offsets = [8, 0], sizes = [8, 200], strides = [1, 1]} : vector<16x200xf32> to vector<8x200xf32>
    %c0_44 = arith.constant 0 : index
    %c1 = arith.constant 1 : index
    %c0_45 = arith.constant 0 : index
    %132 = vector.load %arg11[%c0_44, %c1, %c0_45] : memref<8x2x200xf32, #tpu.memory_space<vmem>>, vector<8x1x200xf32>
    %133 = vector.shape_cast %132 : vector<8x1x200xf32> to vector<8x200xf32>
    %134 = vector.shape_cast %131 : vector<8x200xf32> to vector<8x1x200xf32>
    tpu.vector_store %arg11[%c0_44, %c1, %c0_45], %134 {strides = array<i32>} : memref<8x2x200xf32, #tpu.memory_space<vmem>>, vector<8x1x200xf32>,
    return
  }
  func.func @transform_0(%arg0: i32, %arg1: memref<16xi32, #tpu.memory_space<smem>>) -> (i32, i32, i32) {
    %c0_i32 = arith.constant 0 : i32
    %c0_i32_0 = arith.constant 0 : i32
    %c0_i32_1 = arith.constant 0 : i32
    return %arg0, %c0_i32, %c0_i32_0 : i32, i32, i32
  }
  func.func @transform_1(%arg0: i32, %arg1: memref<16xi32, #tpu.memory_space<smem>>) -> (i32, i32) {
    %c0_i32 = arith.constant 0 : i32
    %c0_i32_0 = arith.constant 0 : i32
    %c0_i32_1 = arith.constant 0 : i32
    return %c0_i32, %c0_i32_0 : i32, i32
  }
  func.func @transform_2(%arg0: i32, %arg1: memref<16xi32, #tpu.memory_space<smem>>) -> (i32, i32) {
    %c0_i32 = arith.constant 0 : i32
    %c0_i32_0 = arith.constant 0 : i32
    %c0_i32_1 = arith.constant 0 : i32
    return %c0_i32, %c0_i32_0 : i32, i32
  }
  func.func @transform_3(%arg0: i32, %arg1: memref<16xi32, #tpu.memory_space<smem>>) -> (i32, i32) {
    %c0_i32 = arith.constant 0 : i32
    %c0_i32_0 = arith.constant 0 : i32
    %c0_i32_1 = arith.constant 0 : i32
    return %c0_i32, %c0_i32_0 : i32, i32
  }
  func.func @transform_4(%arg0: i32, %arg1: memref<16xi32, #tpu.memory_space<smem>>) -> (i32, i32) {
    %c0_i32 = arith.constant 0 : i32
    %c0_i32_0 = arith.constant 0 : i32
    %c0_i32_1 = arith.constant 0 : i32
    return %c0_i32, %c0_i32_0 : i32, i32
  }
  func.func @transform_5(%arg0: i32, %arg1: memref<16xi32, #tpu.memory_space<smem>>) -> (i32, i32) {
    %c0_i32 = arith.constant 0 : i32
    %c0_i32_0 = arith.constant 0 : i32
    %c0_i32_1 = arith.constant 0 : i32
    return %c0_i32, %c0_i32_0 : i32, i32
  }
  func.func @transform_6(%arg0: i32, %arg1: memref<16xi32, #tpu.memory_space<smem>>) -> (i32, i32) {
    %c0_i32 = arith.constant 0 : i32
    %c0_i32_0 = arith.constant 0 : i32
    %c0_i32_1 = arith.constant 0 : i32
    return %c0_i32, %c0_i32_0 : i32, i32
  }
  func.func @transform_7(%arg0: i32, %arg1: memref<16xi32, #tpu.memory_space<smem>>) -> (i32, i32) {
    %c0_i32 = arith.constant 0 : i32
    %c0_i32_0 = arith.constant 0 : i32
    %c0_i32_1 = arith.constant 0 : i32
    return %c0_i32, %c0_i32_0 : i32, i32
  }
  func.func @transform_8(%arg0: i32, %arg1: memref<16xi32, #tpu.memory_space<smem>>) -> (i32, i32) {
    %c0_i32 = arith.constant 0 : i32
    %c0_i32_0 = arith.constant 0 : i32
    %c0_i32_1 = arith.constant 0 : i32
    return %c0_i32, %c0_i32_0 : i32, i32
  }
  func.func @transform_9(%arg0: i32, %arg1: memref<16xi32, #tpu.memory_space<smem>>) -> (i32, i32, i32) {
    %c0_i32 = arith.constant 0 : i32
    %c0_i32_0 = arith.constant 0 : i32
    %c0_i32_1 = arith.constant 0 : i32
    return %arg0, %c0_i32, %c0_i32_0 : i32, i32, i32
  }
}

</mosaic_0001>

<llo_original>
// kernel: tpu_custom_call.1
$region0: #{tpu_custom_call.1}
  #allocation0 [shape = 'u32[]', space=smem, size = 0x4, offset = 0x4, fixed_abs, tag = 'smem constant byte address 0x4 - core index']
  #allocation1 [shape = 'u32[144,128]{1,0:T(1,128)}', space=vmem, size = 0x12000, scoped, tag = 'internal scratch']
  #allocation2 [shape = 's32[1]{0}', space=sflag, size = 0x4, scoped, tag = 'scoped memory for tpu_custom_call.1']
  #allocation3 [shape = 'u8[512]{0}', space=smem, size = 0x200, scoped, tag = 'prefetched SMEM operand 0']
  %s0 = inlined_call_operand.vmem [shape: s32[16], index: 0, kind: input, shape index: {}]
  %s1 = inlined_call_operand.hbm [shape: f32[16,8,32], index: 1, kind: input, shape index: {}]
  %s2 = inlined_call_operand.vmem [shape: f32[32,96], index: 2, kind: input, shape index: {}]
  %s3 = inlined_call_operand.vmem [shape: f32[1,96], index: 3, kind: input, shape index: {}]
  %s4 = inlined_call_operand.vmem [shape: f32[32,16], index: 4, kind: input, shape index: {}]
  %s5 = inlined_call_operand.vmem [shape: f32[1,16], index: 5, kind: input, shape index: {}]
  %s6 = inlined_call_operand.vmem [shape: f32[16,8], index: 6, kind: input, shape index: {}]
  %s7 = inlined_call_operand.vmem [shape: f32[1,8], index: 7, kind: input, shape index: {}]
  %s8 = inlined_call_operand.vmem [shape: f32[8,200], index: 8, kind: input, shape index: {}]
  %s9 = inlined_call_operand.vmem [shape: f32[1,200], index: 9, kind: input, shape index: {}]
  %s10 = inlined_call_operand.hbm [shape: f32[16,2,200], index: 10, kind: output, shape index: {}]
  %s11 = sld [smem:[#allocation0]]
  $region73: #{tpu_custom_call.1} parent=0
    _
  %s13 = ssub.s32 1, %s11
  %s14 = scalar_select 0, %s13, %s11
  %s15 = sshll.u32 %s0, 4
  %s16 = int_to_ptr.vmem [resolvable:$true] %s15
  %18 = dma.vmem_to_smem %s16, 16, [#allocation3], [#allocation2]
  %19 = dma.done [#allocation2], 16
  %20 = sfence
  $region1: #{tpu_custom_call.1} parent=0
    #allocation4 [shape = 'u8[65536]{0}', space=vmem, size = 0x10000, scoped, tag = 'input window, operand 1']
    #allocation5 [shape = 's32[2]{0}', space=sflag, size = 0x8, scoped, tag = 'scoped memory for tpu_custom_call.1']
    #allocation6 [shape = 's32[2]{0}', space=sflag, size = 0x8, scoped, tag = 'scoped memory for tpu_custom_call.1']
    #allocation7 [shape = 'u8[32768]{0}', space=vmem, size = 0x8000, scoped, tag = 'output window, operand 0']
    %21 = vsyncpa [#allocation5], 0
    %s22 = scalar_lea.sflag [#allocation5], 1
    %23 = vsyncpa %s22, 0
    %24 = vsyncpa [#allocation6], 0
    %s25 = scalar_lea.sflag [#allocation6], 1
    %26 = vsyncpa %s25, 0
    loop: start=0, step=1, limit=4
    $region2: #{tpu_custom_call.1} parent=1 // loop_pre_header
      _
    $region3: #{tpu_custom_call.1} parent=1 // loop_header
      %s28 = sphi 0, %s32
      %p29 = scmp.ge.s32.totalorder %s28, 4
      %s38 = sphi 0, %s40
      %s41 = sphi 0, %s38
      %s42 = sphi 0, %s41
      %s58 = sphi 0, %s42
      %s62 = sphi 0, %s62
      %s64 = sphi 0, %s62
      %s65 = sphi 0, %s64
      %s79 = sphi 0, %s65
      %s83 = sphi 0, %s83
      %s85 = sphi 0, %s83
      %s86 = sphi 0, %s85
      %s100 = sphi 0, %s86
      %s104 = sphi 0, %s104
      %s106 = sphi 0, %s104
      %s107 = sphi 0, %s106
      %s121 = sphi 0, %s107
      %s125 = sphi 0, %s125
      %s127 = sphi 0, %s125
      %s128 = sphi 0, %s127
      %s142 = sphi 0, %s128
      %s146 = sphi 0, %s146
      %s148 = sphi 0, %s146
      %s149 = sphi 0, %s148
      %s163 = sphi 0, %s149
      %s167 = sphi 0, %s167
      %s169 = sphi 0, %s167
      %s170 = sphi 0, %s169
      %s184 = sphi 0, %s170
      %s188 = sphi 0, %s188
      %s190 = sphi 0, %s188
      %s191 = sphi 0, %s190
      %s205 = sphi 0, %s191
      %s209 = sphi 0, %s209
      %s211 = sphi 0, %s209
      %s212 = sphi 0, %s211
      %s226 = sphi 0, %s212
      %s232 = sphi 0, %s234
      %s235 = sphi 0, %s232
      %s236 = sphi 0, %s235
      %s252 = sphi 0, %s236
    $region4: #{tpu_custom_call.1} parent=1 // loop_header_branch
      %31 = sbr.rel (%p29) target = $region8
    $region5: #{tpu_custom_call.1} parent=1 // loop_body
      %s33 = ssub.s32 %s28, 1
      %s34 = ssub.s32 %s28, 2
      %s35 = sadd.s32 %s28, 1
      %s36 = ssub.s32 %s28, %s35
      %p37 = scmp.eq.s32.totalorder %s36, 0
      %s39 = sadd.s32 %s38, 1
      %s40 = scalar_select %p37, %s38, %s39
      %p43 = pneg %p37
      %p44 = scmp.eq.s32.totalorder %s28, 1
      %p45 = por %p43, %p44
      %p46 = scmp.ne.s32.totalorder %s38, %s41
      %p47 = scmp.eq.s32.totalorder %s28, 0
      %p48 = por %p46, %p47
      %p49 = scmp.ne.s32.totalorder %s38, %s41
      %p50 = scmp.eq.s32.totalorder %s33, 1
      %p51 = por %p49, %p50
      %p52 = scmp.ne.s32.totalorder %s41, %s42
      %p53 = scmp.eq.s32.totalorder %s33, 0
      %p54 = por %p52, %p53
      %p55 = scmp.ne.s32.totalorder %s41, %s42
      %p56 = scmp.eq.s32.totalorder %s34, 1
      %p57 = por %p55, %p56
      %p59 = scmp.ne.s32.totalorder %s42, %s58
      %p60 = scmp.eq.s32.totalorder %s34, 0
      %p61 = por %p59, %p60
      %s63 = sadd.s32 %s62, 1
      %p66 = scmp.eq.s32.totalorder %s28, 1
      %p67 = scmp.ne.s32.totalorder %s62, %s64
      %p68 = scmp.eq.s32.totalorder %s28, 0
      %p69 = por %p67, %p68
      %p70 = scmp.ne.s32.totalorder %s62, %s64
      %p71 = scmp.eq.s32.totalorder %s33, 1
      %p72 = por %p70, %p71
      %p73 = scmp.ne.s32.totalorder %s64, %s65
      %p74 = scmp.eq.s32.totalorder %s33, 0
      %p75 = por %p73, %p74
      %p76 = scmp.ne.s32.totalorder %s64, %s65
      %p77 = scmp.eq.s32.totalorder %s34, 1
      %p78 = por %p76, %p77
      %p80 = scmp.ne.s32.totalorder %s65, %s79
      %p81 = scmp.eq.s32.totalorder %s34, 0
      %p82 = por %p80, %p81
      %s84 = sadd.s32 %s83, 1
      %p87 = scmp.eq.s32.totalorder %s28, 1
      %p88 = scmp.ne.s32.totalorder %s83, %s85
      %p89 = scmp.eq.s32.totalorder %s28, 0
      %p90 = por %p88, %p89
      %p91 = scmp.ne.s32.totalorder %s83, %s85
      %p92 = scmp.eq.s32.totalorder %s33, 1
      %p93 = por %p91, %p92
      %p94 = scmp.ne.s32.totalorder %s85, %s86
      %p95 = scmp.eq.s32.totalorder %s33, 0
      %p96 = por %p94, %p95
      %p97 = scmp.ne.s32.totalorder %s85, %s86
      %p98 = scmp.eq.s32.totalorder %s34, 1
      %p99 = por %p97, %p98
      %p101 = scmp.ne.s32.totalorder %s86, %s100
      %p102 = scmp.eq.s32.totalorder %s34, 0
      %p103 = por %p101, %p102
      %s105 = sadd.s32 %s104, 1
      %p108 = scmp.eq.s32.totalorder %s28, 1
      %p109 = scmp.ne.s32.totalorder %s104, %s106
      %p110 = scmp.eq.s32.totalorder %s28, 0
      %p111 = por %p109, %p110
      %p112 = scmp.ne.s32.totalorder %s104, %s106
      %p113 = scmp.eq.s32.totalorder %s33, 1
      %p114 = por %p112, %p113
      %p115 = scmp.ne.s32.totalorder %s106, %s107
      %p116 = scmp.eq.s32.totalorder %s33, 0
      %p117 = por %p115, %p116
      %p118 = scmp.ne.s32.totalorder %s106, %s107
      %p119 = scmp.eq.s32.totalorder %s34, 1
      %p120 = por %p118, %p119
      %p122 = scmp.ne.s32.totalorder %s107, %s121
      %p123 = scmp.eq.s32.totalorder %s34, 0
      %p124 = por %p122, %p123
      %s126 = sadd.s32 %s125, 1
      %p129 = scmp.eq.s32.totalorder %s28, 1
      %p130 = scmp.ne.s32.totalorder %s125, %s127
      %p131 = scmp.eq.s32.totalorder %s28, 0
      %p132 = por %p130, %p131
      %p133 = scmp.ne.s32.totalorder %s125, %s127
      %p134 = scmp.eq.s32.totalorder %s33, 1
      %p135 = por %p133, %p134
      %p136 = scmp.ne.s32.totalorder %s127, %s128
      %p137 = scmp.eq.s32.totalorder %s33, 0
      %p138 = por %p136, %p137
      %p139 = scmp.ne.s32.totalorder %s127, %s128
      %p140 = scmp.eq.s32.totalorder %s34, 1
      %p141 = por %p139, %p140
      %p143 = scmp.ne.s32.totalorder %s128, %s142
      %p144 = scmp.eq.s32.totalorder %s34, 0
      %p145 = por %p143, %p144
      %s147 = sadd.s32 %s146, 1
      %p150 = scmp.eq.s32.totalorder %s28, 1
      %p151 = scmp.ne.s32.totalorder %s146, %s148
      %p152 = scmp.eq.s32.totalorder %s28, 0
      %p153 = por %p151, %p152
      %p154 = scmp.ne.s32.totalorder %s146, %s148
      %p155 = scmp.eq.s32.totalorder %s33, 1
      %p156 = por %p154, %p155
      %p157 = scmp.ne.s32.totalorder %s148, %s149
      %p158 = scmp.eq.s32.totalorder %s33, 0
      %p159 = por %p157, %p158
      %p160 = scmp.ne.s32.totalorder %s148, %s149
      %p161 = scmp.eq.s32.totalorder %s34, 1
      %p162 = por %p160, %p161
      %p164 = scmp.ne.s32.totalorder %s149, %s163
      %p165 = scmp.eq.s32.totalorder %s34, 0
      %p166 = por %p164, %p165
      %s168 = sadd.s32 %s167, 1
      %p171 = scmp.eq.s32.totalorder %s28, 1
      %p172 = scmp.ne.s32.totalorder %s167, %s169
      %p173 = scmp.eq.s32.totalorder %s28, 0
      %p174 = por %p172, %p173
      %p175 = scmp.ne.s32.totalorder %s167, %s169
      %p176 = scmp.eq.s32.totalorder %s33, 1
      %p177 = por %p175, %p176
      %p178 = scmp.ne.s32.totalorder %s169, %s170
      %p179 = scmp.eq.s32.totalorder %s33, 0
      %p180 = por %p178, %p179
      %p181 = scmp.ne.s32.totalorder %s169, %s170
      %p182 = scmp.eq.s32.totalorder %s34, 1
      %p183 = por %p181, %p182
      %p185 = scmp.ne.s32.totalorder %s170, %s184
      %p186 = scmp.eq.s32.totalorder %s34, 0
      %p187 = por %p185, %p186
      %s189 = sadd.s32 %s188, 1
      %p192 = scmp.eq.s32.totalorder %s28, 1
      %p193 = scmp.ne.s32.totalorder %s188, %s190
      %p194 = scmp.eq.s32.totalorder %s28, 0
      %p195 = por %p193, %p194
      %p196 = scmp.ne.s32.totalorder %s188, %s190
      %p197 = scmp.eq.s32.totalorder %s33, 1
      %p198 = por %p196, %p197
      %p199 = scmp.ne.s32.totalorder %s190, %s191
      %p200 = scmp.eq.s32.totalorder %s33, 0
      %p201 = por %p199, %p200
      %p202 = scmp.ne.s32.totalorder %s190, %s191
      %p203 = scmp.eq.s32.totalorder %s34, 1
      %p204 = por %p202, %p203
      %p206 = scmp.ne.s32.totalorder %s191, %s205
      %p207 = scmp.eq.s32.totalorder %s34, 0
      %p208 = por %p206, %p207
      %s210 = sadd.s32 %s209, 1
      %p213 = scmp.eq.s32.totalorder %s28, 1
      %p214 = scmp.ne.s32.totalorder %s209, %s211
      %p215 = scmp.eq.s32.totalorder %s28, 0
      %p216 = por %p214, %p215
      %p217 = scmp.ne.s32.totalorder %s209, %s211
      %p218 = scmp.eq.s32.totalorder %s33, 1
      %p219 = por %p217, %p218
      %p220 = scmp.ne.s32.totalorder %s211, %s212
      %p221 = scmp.eq.s32.totalorder %s33, 0
      %p222 = por %p220, %p221
      %p223 = scmp.ne.s32.totalorder %s211, %s212
      %p224 = scmp.eq.s32.totalorder %s34, 1
      %p225 = por %p223, %p224
      %p227 = scmp.ne.s32.totalorder %s212, %s226
      %p228 = scmp.eq.s32.totalorder %s34, 0
      %p229 = por %p227, %p228
      %s230 = ssub.s32 %s28, %s35
      %p231 = scmp.eq.s32.totalorder %s230, 0
      %s233 = sadd.s32 %s232, 1
      %s234 = scalar_select %p231, %s232, %s233
      %p237 = pneg %p231
      %p238 = scmp.eq.s32.totalorder %s28, 1
      %p239 = por %p237, %p238
      %p240 = scmp.ne.s32.totalorder %s232, %s235
      %p241 = scmp.eq.s32.totalorder %s28, 0
      %p242 = por %p240, %p241
      %p243 = scmp.ne.s32.totalorder %s232, %s235
      %p244 = scmp.eq.s32.totalorder %s33, 1
      %p245 = por %p243, %p244
      %p246 = scmp.ne.s32.totalorder %s235, %s236
      %p247 = scmp.eq.s32.totalorder %s33, 0
      %p248 = por %p246, %p247
      %p249 = scmp.ne.s32.totalorder %s235, %s236
      %p250 = scmp.eq.s32.totalorder %s34, 1
      %p251 = por %p249, %p250
      %p253 = scmp.ne.s32.totalorder %s236, %s252
      %p254 = scmp.eq.s32.totalorder %s34, 0
      %p255 = por %p253, %p254
      %p256 = scmp.le.s32.totalorder 1, %s28
      %p257 = scmp.lt.s32.totalorder %s28, 3
      %p258 = pnand %p256, %p257
      %p259 = pneg %p258
      // Predicated region
      $region9: #{tpu_custom_call.1} parent=5 // pred_check
        _
      $region10: #{tpu_custom_call.1} parent=5 // pred_check_branch
        %261 = sbr.rel (%p258) target = $region12
      $region11: #{tpu_custom_call.1} parent=5 // pred_region
        %s262 = ssub.s32 %s28, 1
        // Predicated region
        $region13: #{tpu_custom_call.1} parent=11 // pred_check
          %p263 = pneg %p75
        $region14: #{tpu_custom_call.1} parent=11 // pred_check_branch
          %265 = sbr.rel (%p263) target = $region16
        $region15: #{tpu_custom_call.1} parent=11 // pred_region
          _
        $region16: #{tpu_custom_call.1} parent=11 // pred_fallthru
          _
        // Predicated region
        $region17: #{tpu_custom_call.1} parent=11 // pred_check
          %p266 = pneg %p96
        $region18: #{tpu_custom_call.1} parent=11 // pred_check_branch
          %268 = sbr.rel (%p266) target = $region20
        $region19: #{tpu_custom_call.1} parent=11 // pred_region
          _
        $region20: #{tpu_custom_call.1} parent=11 // pred_fallthru
          _
        // Predicated region
        $region21: #{tpu_custom_call.1} parent=11 // pred_check
          %p269 = pneg %p117
        $region22: #{tpu_custom_call.1} parent=11 // pred_check_branch
          %271 = sbr.rel (%p269) target = $region24
        $region23: #{tpu_custom_call.1} parent=11 // pred_region
          _
        $region24: #{tpu_custom_call.1} parent=11 // pred_fallthru
          _
        // Predicated region
        $region25: #{tpu_custom_call.1} parent=11 // pred_check
          %p272 = pneg %p138
        $region26: #{tpu_custom_call.1} parent=11 // pred_check_branch
          %274 = sbr.rel (%p272) target = $region28
        $region27: #{tpu_custom_call.1} parent=11 // pred_region
          _
        $region28: #{tpu_custom_call.1} parent=11 // pred_fallthru
          _
        // Predicated region
        $region29: #{tpu_custom_call.1} parent=11 // pred_check
          %p275 = pneg %p159
        $region30: #{tpu_custom_call.1} parent=11 // pred_check_branch
          %277 = sbr.rel (%p275) target = $region32
        $region31: #{tpu_custom_call.1} parent=11 // pred_region
          _
        $region32: #{tpu_custom_call.1} parent=11 // pred_fallthru
          _
        // Predicated region
        $region33: #{tpu_custom_call.1} parent=11 // pred_check
          %p278 = pneg %p180
        $region34: #{tpu_custom_call.1} parent=11 // pred_check_branch
          %280 = sbr.rel (%p278) target = $region36
        $region35: #{tpu_custom_call.1} parent=11 // pred_region
          _
        $region36: #{tpu_custom_call.1} parent=11 // pred_fallthru
          _
        // Predicated region
        $region37: #{tpu_custom_call.1} parent=11 // pred_check
          %p281 = pneg %p201
        $region38: #{tpu_custom_call.1} parent=11 // pred_check_branch
          %283 = sbr.rel (%p281) target = $region40
        $region39: #{tpu_custom_call.1} parent=11 // pred_region
          _
        $region40: #{tpu_custom_call.1} parent=11 // pred_fallthru
          _
        // Predicated region
        $region41: #{tpu_custom_call.1} parent=11 // pred_check
          %p284 = pneg %p222
        $region42: #{tpu_custom_call.1} parent=11 // pred_check_branch
          %286 = sbr.rel (%p284) target = $region44
        $region43: #{tpu_custom_call.1} parent=11 // pred_region
          _
        $region44: #{tpu_custom_call.1} parent=11 // pred_fallthru
          _
      $region12: #{tpu_custom_call.1} parent=5 // pred_fallthru
        _
      %p287 = scmp.lt.s32.totalorder %s28, 2
      // Predicated region
      $region45: #{tpu_custom_call.1} parent=5 // pred_check
        %p288 = pneg %p287
      $region46: #{tpu_custom_call.1} parent=5 // pred_check_branch
        %290 = sbr.rel (%p288) target = $region48
      $region47: #{tpu_custom_call.1} parent=5 // pred_region
        // Predicated region
        $region49: #{tpu_custom_call.1} parent=47 // pred_check
          %p291 = pneg %p48
        $region50: #{tpu_custom_call.1} parent=47 // pred_check_branch
          %293 = sbr.rel (%p291) target = $region52
        $region51: #{tpu_custom_call.1} parent=47 // pred_region
          %s294 = sand.u32 %s38, 1
          %s295 = scalar_lea.sflag [#allocation5], %s294
          %s296 = sand.u32 %s38, 1
          %s297 = smul.addr %s296, 64
          %s298 = scalar_lea.vmem [#allocation4], %s297
          %s299 = smul.u32 8, %s28
          %s301 = ssub.s32 1024, 1024
          %302 = vsyncadd %s295, %s301
          %s303 = smul.addr %s299, 128
          %s304 = scalar_lea.hbm %s1, %s303
          %s305 = sshll.u32 %s298, 4
          %s306 = int_to_ptr.vmem [resolvable:$true] %s305
          %311 = dma.hbm_to_vmem [thread:$0]  %s304, 1024, %s306, %s295, 128, 128, 8
        $region52: #{tpu_custom_call.1} parent=47 // pred_fallthru
          _
      $region48: #{tpu_custom_call.1} parent=5 // pred_fallthru
        _
      %p312 = scmp.le.s32.totalorder 1, %s28
      %p313 = scmp.lt.s32.totalorder %s28, 3
      %p314 = pnand %p312, %p313
      %p315 = pneg %p314
      // Predicated region
      $region53: #{tpu_custom_call.1} parent=5 // pred_check
        _
      $region54: #{tpu_custom_call.1} parent=5 // pred_check_branch
        %317 = sbr.rel (%p314) target = $region56
      $region55: #{tpu_custom_call.1} parent=5 // pred_region
        %s318 = ssub.s32 %s28, 1
        %s319 = sand.u32 %s41, 1
        %s320 = scalar_lea.sflag [#allocation5], %s319
        %s321 = sand.u32 %s41, 1
        %s322 = smul.addr %s321, 64
        %s323 = scalar_lea.vmem [#allocation4], %s322
        // Predicated region
        $region57: #{tpu_custom_call.1} parent=55 // pred_check
          %p324 = pneg %p54
        $region58: #{tpu_custom_call.1} parent=55 // pred_check_branch
          %326 = sbr.rel (%p324) target = $region60
        $region59: #{tpu_custom_call.1} parent=55 // pred_region
          %327 = dma.done %s320, 1024
        $region60: #{tpu_custom_call.1} parent=55 // pred_fallthru
          _
        %s328 = sand.u32 %s41, 1
        %s329 = scalar_lea.sflag [#allocation5], %s328
        %s330 = sand.u32 %s41, 1
        %s331 = smul.addr %s330, 64
        %s332 = scalar_lea.vmem [#allocation4], %s331
        %p333 = pneg %p54
        %p334 = pneg %p51
        %p335 = pneg %p75
        %p336 = pneg %p72
        %p337 = pneg %p96
        %p338 = pneg %p93
        %p339 = pneg %p117
        %p340 = pneg %p114
        %p341 = pneg %p138
        %p342 = pneg %p135
        %p343 = pneg %p159
        %p344 = pneg %p156
        %p345 = pneg %p180
        %p346 = pneg %p177
        %p347 = pneg %p201
        %p348 = pneg %p198
        %p349 = pneg %p222
        %p350 = pneg %p219
        %p351 = pneg %p248
        %p352 = pneg %p245
        %s353 = sand.u32 %s235, 1
        %s354 = scalar_lea.sflag [#allocation6], %s353
        %s355 = sand.u32 %s235, 1
        %s356 = smul.addr %s355, 32
        %s357 = scalar_lea.vmem [#allocation7], %s356
        %s358 = smul.u32 8, %s33
        %s359 = smul.u32 8, %s33
        %s360 = smul.u32 %s33, 8
        %v361 = vld [vmem:[%s323] sm:$0xff]
        %v362 = vld [vmem:[%s323 + $0x8] sm:$0xff]
        %v363 = vld [vmem:[%s323 + $0x10] sm:$0xff]
        %v364 = vld [vmem:[%s323 + $0x18] sm:$0xff]
        %v365 = vld [vmem:[%s323 + $0x20] sm:$0xff]
        %v366 = vld [vmem:[%s323 + $0x28] sm:$0xff]
        %v367 = vld [vmem:[%s323 + $0x30] sm:$0xff]
        %v368 = vld [vmem:[%s323 + $0x38] sm:$0xff]
        %v369 = vld [vmem:[%s2] sm:$0xff]
        %v370 = vld [vmem:[%s2 + $0x8] sm:$0xff]
        %v371 = vld [vmem:[%s2 + $0x10] sm:$0xff]
        %v372 = vld [vmem:[%s2 + $0x18] sm:$0xff]
        %v373 = vld [vmem:[%s3] sm:$0x1]
        %v375 = vlaneseq
        %v376 = vshrl.u32 %v375, 7
        %v377 = vsub.s32 0, %v376
        %v378 = vrot.slane %v373, %v377
        %vm380 = vcmask 261120
        %v382 = vsel %vm380, %v361, 0
        %v385 = vsel %vm380, %v362, 0
        %v388 = vsel %vm380, %v363, 0
        %v391 = vsel %vm380, %v364, 0
        %v394 = vsel %vm380, %v365, 0
        %v397 = vsel %vm380, %v366, 0
        %v400 = vsel %vm380, %v367, 0
        %v403 = vsel %vm380, %v368, 0
        %405 = vmatprep.subr.mxu0 0.0
        %406 = vmatpush1.msra.mxu0 0.0
        %407 = vmatprep.subr.mxu0 0.0
        %408 = vmatpush1.msra.mxu0 0.0
        %409 = vmatprep.subr.mxu0 0.0
        %410 = vmatpush1.msra.mxu0 0.0
        %411 = vmatprep.subr.mxu0 0.0
        %412 = vmatpush1.msra.mxu0 0.0
        %413 = vmatprep.subr.mxu0 0.0
        %414 = vmatpush1.msra.mxu0 0.0
        %415 = vmatprep.subr.mxu0 0.0
        %416 = vmatpush1.msra.mxu0 0.0
        %417 = vmatprep.subr.mxu0 0.0
        %418 = vmatpush1.msra.mxu0 0.0
        %419 = vmatprep.subr.mxu0 0.0
        %420 = vmatpush1.msra.mxu0 0.0
        %421 = vmatprep.subr.mxu0 0.0
        %422 = vmatpush1.msra.mxu0 0.0
        %423 = vmatprep.subr.mxu0 0.0
        %424 = vmatpush1.msra.mxu0 0.0
        %425 = vmatprep.subr.mxu0 0.0
        %426 = vmatpush1.msra.mxu0 0.0
        %427 = vmatprep.subr.mxu0 0.0
        %428 = vmatpush1.msra.mxu0 0.0
        %429 = vmatprep.subr.mxu0 0.0
        %430 = vmatpush1.msra.mxu0 %v372
        %431 = vmatprep.subr.mxu0 0.0
        %432 = vmatpush1.msra.mxu0 %v371
        %433 = vmatprep.subr.mxu0 0.0
        %434 = vmatpush1.msra.mxu0 %v370
        %435 = vmatprep.subr.mxu0 0.0
        %436 = vmatpush1.msra.mxu0 %v369
        %437 = vmatprep.subr.mxu0 0.0
        %438 = vmatpush2.msra.mxu0 0.0
        %439 = vmatprep.subr.mxu0 0.0
        %440 = vmatpush2.msra.mxu0 0.0
        %441 = vmatprep.subr.mxu0 0.0
        %442 = vmatpush2.msra.mxu0 0.0
        %443 = vmatprep.subr.mxu0 0.0
        %444 = vmatpush2.msra.mxu0 0.0
        %445 = vmatprep.subr.mxu0 0.0
        %446 = vmatpush2.msra.mxu0 0.0
        %447 = vmatprep.subr.mxu0 0.0
        %448 = vmatpush2.msra.mxu0 0.0
        %449 = vmatprep.subr.mxu0 0.0
        %450 = vmatpush2.msra.mxu0 0.0
        %451 = vmatprep.subr.mxu0 0.0
        %452 = vmatpush2.msra.mxu0 0.0
        %453 = vmatprep.subr.mxu0 0.0
        %454 = vmatpush2.msra.mxu0 0.0
        %455 = vmatprep.subr.mxu0 0.0
        %456 = vmatpush2.msra.mxu0 0.0
        %457 = vmatprep.subr.mxu0 0.0
        %458 = vmatpush2.msra.mxu0 0.0
        %459 = vmatprep.subr.mxu0 0.0
        %460 = vmatpush2.msra.mxu0 0.0
        %461 = vmatprep.subr.mxu0 0.0
        %462 = vmatpush2.msra.mxu0 0.0
        %463 = vmatprep.subr.mxu0 0.0
        %464 = vmatpush2.msra.mxu0 0.0
        %465 = vmatprep.subr.mxu0 0.0
        %466 = vmatpush2.msra.mxu0 0.0
        %467 = vmatprep.subr.mxu0 0.0
        %468 = vmatpush2.msra.mxu0 0.0
        %469 = vmatprep.mubr.f32.mxu0 0.0
        %470 = vmatmul.mubr.f32.gmra.mxu0 %v382
        %v471 = vpop.f32.mrf.mxu0
        %v472 = vadd.f32 %v378, %v471
        %v473 = vpop.f32.mrf.mxu0
        %474 = vmatprep.mubr.f32.mxu0 0.0
        %475 = vmatmul.mubr.f32.gmra.mxu0 %v385
        %v476 = vpop.f32.mrf.mxu0
        %v477 = vadd.f32 %v378, %v476
        %v478 = vpop.f32.mrf.mxu0
        %479 = vmatprep.mubr.f32.mxu0 0.0
        %480 = vmatmul.mubr.f32.gmra.mxu0 %v388
        %v481 = vpop.f32.mrf.mxu0
        %v482 = vadd.f32 %v378, %v481
        %v483 = vpop.f32.mrf.mxu0
        %484 = vmatprep.mubr.f32.mxu0 0.0
        %485 = vmatmul.mubr.f32.gmra.mxu0 %v391
        %v486 = vpop.f32.mrf.mxu0
        %v487 = vadd.f32 %v378, %v486
        %v488 = vpop.f32.mrf.mxu0
        %489 = vmatprep.mubr.f32.mxu0 0.0
        %490 = vmatmul.mubr.f32.gmra.mxu0 %v394
        %v491 = vpop.f32.mrf.mxu0
        %v492 = vadd.f32 %v378, %v491
        %v493 = vpop.f32.mrf.mxu0
        %494 = vmatprep.mubr.f32.mxu0 0.0
        %495 = vmatmul.mubr.f32.gmra.mxu0 %v397
        %v496 = vpop.f32.mrf.mxu0
        %v497 = vadd.f32 %v378, %v496
        %v498 = vpop.f32.mrf.mxu0
        %499 = vmatprep.mubr.f32.mxu0 0.0
        %500 = vmatmul.mubr.f32.gmra.mxu0 %v400
        %v501 = vpop.f32.mrf.mxu0
        %v502 = vadd.f32 %v378, %v501
        %v503 = vpop.f32.mrf.mxu0
        %504 = vmatprep.mubr.f32.mxu0 0.0
        %505 = vmatmul.mubr.f32.gmra.mxu0 %v403
        %v506 = vpop.f32.mrf.mxu0
        %v507 = vadd.f32 %v378, %v506
        %v508 = vpop.f32.mrf.mxu0
        %509 = vdwg.mxu0
        %v510 = vlaneseq
        %v511 = vshrl.u32 %v510, 7
        %v512 = vlaneseq
        %v513 = vand.u32 %v512, 127
        %vm514 = vcmp.eq.s32.totalorder %v511, 0
        %s515 = sld [smem:[#allocation3 + %s360]]
        %v516 = vstv %s515
        %v517 = vsel %vm514, %v516, 0
        %vm518 = vcmp.eq.s32.totalorder %v511, 1
        %s519 = sadd.s32 %s360, 1
        %s520 = sld [smem:[#allocation3 + %s519]]
        %v521 = vstv %s520
        %v522 = vsel %vm518, %v521, %v517
        %vm523 = vcmp.eq.s32.totalorder %v511, 2
        %s524 = sadd.s32 %s360, 2
        %s525 = sld [smem:[#allocation3 + %s524]]
        %v526 = vstv %s525
        %v527 = vsel %vm523, %v526, %v522
        %vm528 = vcmp.eq.s32.totalorder %v511, 3
        %s529 = sadd.s32 %s360, 3
        %s530 = sld [smem:[#allocation3 + %s529]]
        %v531 = vstv %s530
        %v532 = vsel %vm528, %v531, %v527
        %vm533 = vcmp.eq.s32.totalorder %v511, 4
        %s534 = sadd.s32 %s360, 4
        %s535 = sld [smem:[#allocation3 + %s534]]
        %v536 = vstv %s535
        %v537 = vsel %vm533, %v536, %v532
        %vm538 = vcmp.eq.s32.totalorder %v511, 5
        %s539 = sadd.s32 %s360, 5
        %s540 = sld [smem:[#allocation3 + %s539]]
        %v541 = vstv %s540
        %v542 = vsel %vm538, %v541, %v537
        %vm543 = vcmp.eq.s32.totalorder %v511, 6
        %s544 = sadd.s32 %s360, 6
        %s545 = sld [smem:[#allocation3 + %s544]]
        %v546 = vstv %s545
        %v547 = vsel %vm543, %v546, %v542
        %vm548 = vcmp.eq.s32.totalorder %v511, 7
        %s549 = sadd.s32 %s360, 7
        %s550 = sld [smem:[#allocation3 + %s549]]
        %v551 = vstv %s550
        %v552 = vsel %vm548, %v551, %v547
        %v553 = vsub.s32 %v552, 1
        %vm554 = vcmp.lt.s32.totalorder %v513, %v553
        %vm555 = vcmp.eq.s32.totalorder %v513, %v553
        %v556 = vsel %vm555, 1, 0
        %v557 = vcvt.s32.f32 %v556
        %v558 = vlaneseq
        %v559 = vshrl.u32 %v558, 7
        %v560 = vsub.s32 0, %v559
        %v561 = vrot.slane %v557, %v560
        %563 = vbcast.lane.b32.xlu0 %v561, 256
        %v564 = vpop.permute.xlu0 %563
        %v565 = vlaneseq
        %v566 = vshrl.u32 %v565, 7
        %v567 = vsub.s32 1, %v566
        %v568 = vrot.slane %v557, %v567
        %570 = vbcast.lane.b32.xlu0 %v568, 256
        %v571 = vpop.permute.xlu0 %570
        %v572 = vlaneseq
        %v573 = vshrl.u32 %v572, 7
        %v574 = vsub.s32 2, %v573
        %v575 = vrot.slane %v557, %v574
        %577 = vbcast.lane.b32.xlu0 %v575, 256
        %v578 = vpop.permute.xlu0 %577
        %v579 = vlaneseq
        %v580 = vshrl.u32 %v579, 7
        %v581 = vsub.s32 3, %v580
        %v582 = vrot.slane %v557, %v581
        %584 = vbcast.lane.b32.xlu0 %v582, 256
        %v585 = vpop.permute.xlu0 %584
        %v586 = vlaneseq
        %v587 = vshrl.u32 %v586, 7
        %v588 = vsub.s32 4, %v587
        %v589 = vrot.slane %v557, %v588
        %591 = vbcast.lane.b32.xlu0 %v589, 256
        %v592 = vpop.permute.xlu0 %591
        %v593 = vlaneseq
        %v594 = vshrl.u32 %v593, 7
        %v595 = vsub.s32 5, %v594
        %v596 = vrot.slane %v557, %v595
        %598 = vbcast.lane.b32.xlu0 %v596, 256
        %v599 = vpop.permute.xlu0 %598
        %v600 = vlaneseq
        %v601 = vshrl.u32 %v600, 7
        %v602 = vsub.s32 6, %v601
        %v603 = vrot.slane %v557, %v602
        %605 = vbcast.lane.b32.xlu0 %v603, 256
        %v606 = vpop.permute.xlu0 %605
        %v607 = vlaneseq
        %v608 = vshrl.u32 %v607, 7
        %v609 = vsub.s32 7, %v608
        %v610 = vrot.slane %v557, %v609
        %612 = vbcast.lane.b32.xlu0 %v610, 256
        %v613 = vpop.permute.xlu0 %612
        %v614 = vmul.f32 %v472, %v564
        %v615 = vmul.f32 %v477, %v571
        %v616 = vmul.f32 %v482, %v578
        %v617 = vmul.f32 %v487, %v585
        %v618 = vmul.f32 %v492, %v592
        %v619 = vmul.f32 %v497, %v599
        %v620 = vmul.f32 %v502, %v606
        %v621 = vmul.f32 %v507, %v613
        %v622 = vsel %vm380, %v614, 0.0
        %v623 = vrot.slane %v622, 4
        %v624 = vadd.f32 %v622, %v623
        %v625 = vrot.slane %v624, 2
        %v626 = vadd.f32 %v624, %v625
        %v627 = vrot.slane %v626, 1
        %v628 = vadd.f32 %v626, %v627
        %v629 = vsel %vm380, %v615, 0.0
        %v630 = vrot.slane %v629, 4
        %v631 = vadd.f32 %v629, %v630
        %v632 = vrot.slane %v631, 2
        %v633 = vadd.f32 %v631, %v632
        %v634 = vrot.slane %v633, 1
        %v635 = vadd.f32 %v633, %v634
        %v636 = vsel %vm380, %v616, 0.0
        %v637 = vrot.slane %v636, 4
        %v638 = vadd.f32 %v636, %v637
        %v639 = vrot.slane %v638, 2
        %v640 = vadd.f32 %v638, %v639
        %v641 = vrot.slane %v640, 1
        %v642 = vadd.f32 %v640, %v641
        %v643 = vsel %vm380, %v617, 0.0
        %v644 = vrot.slane %v643, 4
        %v645 = vadd.f32 %v643, %v644
        %v646 = vrot.slane %v645, 2
        %v647 = vadd.f32 %v645, %v646
        %v648 = vrot.slane %v647, 1
        %v649 = vadd.f32 %v647, %v648
        %v650 = vsel %vm380, %v618, 0.0
        %v651 = vrot.slane %v650, 4
        %v652 = vadd.f32 %v650, %v651
        %v653 = vrot.slane %v652, 2
        %v654 = vadd.f32 %v652, %v653
        %v655 = vrot.slane %v654, 1
        %v656 = vadd.f32 %v654, %v655
        %v657 = vsel %vm380, %v619, 0.0
        %v658 = vrot.slane %v657, 4
        %v659 = vadd.f32 %v657, %v658
        %v660 = vrot.slane %v659, 2
        %v661 = vadd.f32 %v659, %v660
        %v662 = vrot.slane %v661, 1
        %v663 = vadd.f32 %v661, %v662
        %v664 = vsel %vm380, %v620, 0.0
        %v665 = vrot.slane %v664, 4
        %v666 = vadd.f32 %v664, %v665
        %v667 = vrot.slane %v666, 2
        %v668 = vadd.f32 %v666, %v667
        %v669 = vrot.slane %v668, 1
        %v670 = vadd.f32 %v668, %v669
        %v671 = vsel %vm380, %v621, 0.0
        %v672 = vrot.slane %v671, 4
        %v673 = vadd.f32 %v671, %v672
        %v674 = vrot.slane %v673, 2
        %v675 = vadd.f32 %v673, %v674
        %v676 = vrot.slane %v675, 1
        %v677 = vadd.f32 %v675, %v676
        %686 = vrot.lane.b32.xlu0 %v472, 96
        %v687 = vpop.permute.xlu0 %686
        %688 = vrot.lane.b32.xlu0 %v477, 96
        %v689 = vpop.permute.xlu0 %688
        %690 = vrot.lane.b32.xlu0 %v482, 96
        %v691 = vpop.permute.xlu0 %690
        %692 = vrot.lane.b32.xlu0 %v487, 96
        %v693 = vpop.permute.xlu0 %692
        %694 = vrot.lane.b32.xlu0 %v492, 96
        %v695 = vpop.permute.xlu0 %694
        %696 = vrot.lane.b32.xlu0 %v497, 96
        %v697 = vpop.permute.xlu0 %696
        %698 = vrot.lane.b32.xlu0 %v502, 96
        %v699 = vpop.permute.xlu0 %698
        %700 = vrot.lane.b32.xlu0 %v507, 96
        %v701 = vpop.permute.xlu0 %700
        %v710 = vmul.f32 %v628, %v687
        %v711 = vmul.f32 %v635, %v689
        %v712 = vmul.f32 %v642, %v691
        %v713 = vmul.f32 %v649, %v693
        %v714 = vmul.f32 %v656, %v695
        %v715 = vmul.f32 %v663, %v697
        %v716 = vmul.f32 %v670, %v699
        %v717 = vmul.f32 %v677, %v701
        %v718 = vsel %vm380, %v710, 0.0
        %719 = vadd.xlane.f32.xlu0 %v718
        %v720 = vpop.xlane.xlu0 %719
        %v721 = vsel %vm380, %v711, 0.0
        %722 = vadd.xlane.f32.xlu0 %v721
        %v723 = vpop.xlane.xlu0 %722
        %v724 = vsel %vm380, %v712, 0.0
        %725 = vadd.xlane.f32.xlu0 %v724
        %v726 = vpop.xlane.xlu0 %725
        %v727 = vsel %vm380, %v713, 0.0
        %728 = vadd.xlane.f32.xlu0 %v727
        %v729 = vpop.xlane.xlu0 %728
        %v730 = vsel %vm380, %v714, 0.0
        %731 = vadd.xlane.f32.xlu0 %v730
        %v732 = vpop.xlane.xlu0 %731
        %v733 = vsel %vm380, %v715, 0.0
        %734 = vadd.xlane.f32.xlu0 %v733
        %v735 = vpop.xlane.xlu0 %734
        %v736 = vsel %vm380, %v716, 0.0
        %737 = vadd.xlane.f32.xlu0 %v736
        %v738 = vpop.xlane.xlu0 %737
        %v739 = vsel %vm380, %v717, 0.0
        %740 = vadd.xlane.f32.xlu0 %v739
        %v741 = vpop.xlane.xlu0 %740
        %v750 = vlaneseq
        %v751 = vshrl.u32 %v750, 7
        %v752 = vsub.s32 %v513, %v751
        %v753 = vrot.slane %v720, %v752
        %v754 = vlaneseq
        %v755 = vshrl.u32 %v754, 7
        %v756 = vsub.s32 %v513, %v755
        %v757 = vrot.slane %v723, %v756
        %v758 = vlaneseq
        %v759 = vshrl.u32 %v758, 7
        %v760 = vsub.s32 %v513, %v759
        %v761 = vrot.slane %v726, %v760
        %v762 = vlaneseq
        %v763 = vshrl.u32 %v762, 7
        %v764 = vsub.s32 %v513, %v763
        %v765 = vrot.slane %v729, %v764
        %v766 = vlaneseq
        %v767 = vshrl.u32 %v766, 7
        %v768 = vsub.s32 %v513, %v767
        %v769 = vrot.slane %v732, %v768
        %v770 = vlaneseq
        %v771 = vshrl.u32 %v770, 7
        %v772 = vsub.s32 %v513, %v771
        %v773 = vrot.slane %v735, %v772
        %v774 = vlaneseq
        %v775 = vshrl.u32 %v774, 7
        %v776 = vsub.s32 %v513, %v775
        %v777 = vrot.slane %v738, %v776
        %v778 = vlaneseq
        %v779 = vshrl.u32 %v778, 7
        %v780 = vsub.s32 %v513, %v779
        %v781 = vrot.slane %v741, %v780
        %vm782 = vcmask 1041409
        %v783 = vsel %vm782, %v757, %v753
        %vm784 = vcmask 1042434
        %v785 = vsel %vm784, %v761, %v783
        %vm786 = vcmask 1043459
        %v787 = vsel %vm786, %v765, %v785
        %vm788 = vcmask 1044484
        %v789 = vsel %vm788, %v769, %v787
        %vm790 = vcmask 1045509
        %v791 = vsel %vm790, %v773, %v789
        %vm792 = vcmask 1046534
        %v793 = vsel %vm792, %v777, %v791
        %vm794 = vcmask 1047559
        %v795 = vsel %vm794, %v781, %v793
        %v797 = vsel %vm554, %v795, -inf
        %vm798 = vcmask 64512
        %v799 = vsel %vm798, %v797, -inf
        %800 = vmax.xlane.f32.xlu0 %v799
        %v801 = vpop.xlane.xlu0 %800
        %v802 = vsub.f32 %v797, %v801
        %v803 = vmul.f32 %v802, 1.442695
        %v804 = vpow.pop %v803
        %v805 = vsel %vm554, %v804, 0.0
        %v806 = vsel %vm798, %v805, 0.0
        %807 = vadd.xlane.f32.xlu0 %v806
        %v808 = vpop.xlane.xlu0 %807
        %v809 = vrcp.pop %v808
        %v810 = vmul.f32 %v805, %v809
        %v811 = vlaneseq
        %v812 = vshrl.u32 %v811, 7
        %v813 = vsub.s32 0, %v812
        %v814 = vrot.slane %v810, %v813
        %816 = vbcast.lane.b32.xlu0 %v814, 256
        %v817 = vpop.permute.xlu0 %816
        %v818 = vlaneseq
        %v819 = vshrl.u32 %v818, 7
        %v820 = vsub.s32 1, %v819
        %v821 = vrot.slane %v810, %v820
        %823 = vbcast.lane.b32.xlu0 %v821, 256
        %v824 = vpop.permute.xlu0 %823
        %v825 = vlaneseq
        %v826 = vshrl.u32 %v825, 7
        %v827 = vsub.s32 2, %v826
        %v828 = vrot.slane %v810, %v827
        %830 = vbcast.lane.b32.xlu0 %v828, 256
        %v831 = vpop.permute.xlu0 %830
        %v832 = vlaneseq
        %v833 = vshrl.u32 %v832, 7
        %v834 = vsub.s32 3, %v833
        %v835 = vrot.slane %v810, %v834
        %837 = vbcast.lane.b32.xlu0 %v835, 256
        %v838 = vpop.permute.xlu0 %837
        %v839 = vlaneseq
        %v840 = vshrl.u32 %v839, 7
        %v841 = vsub.s32 4, %v840
        %v842 = vrot.slane %v810, %v841
        %844 = vbcast.lane.b32.xlu0 %v842, 256
        %v845 = vpop.permute.xlu0 %844
        %v846 = vlaneseq
        %v847 = vshrl.u32 %v846, 7
        %v848 = vsub.s32 5, %v847
        %v849 = vrot.slane %v810, %v848
        %851 = vbcast.lane.b32.xlu0 %v849, 256
        %v852 = vpop.permute.xlu0 %851
        %v853 = vlaneseq
        %v854 = vshrl.u32 %v853, 7
        %v855 = vsub.s32 6, %v854
        %v856 = vrot.slane %v810, %v855
        %858 = vbcast.lane.b32.xlu0 %v856, 256
        %v859 = vpop.permute.xlu0 %858
        %v860 = vlaneseq
        %v861 = vshrl.u32 %v860, 7
        %v862 = vsub.s32 7, %v861
        %v863 = vrot.slane %v810, %v862
        %865 = vbcast.lane.b32.xlu0 %v863, 256
        %v866 = vpop.permute.xlu0 %865
        %v867 = vmul.f32 %v817, %v472
        %v868 = vmul.f32 %v824, %v477
        %v869 = vmul.f32 %v831, %v482
        %v870 = vmul.f32 %v838, %v487
        %v871 = vmul.f32 %v845, %v492
        %v872 = vmul.f32 %v852, %v497
        %v873 = vmul.f32 %v859, %v502
        %v874 = vmul.f32 %v866, %v507
        %vm875 = vcmask 785920
        %v876 = vsel %vm875, %v867, 0.0
        %v877 = vrot.slane %v876, 4
        %v878 = vadd.f32 %v876, %v877
        %v879 = vrot.slane %v878, 2
        %v880 = vadd.f32 %v878, %v879
        %v881 = vrot.slane %v880, 1
        %v882 = vadd.f32 %v880, %v881
        %v883 = vsel %vm875, %v868, 0.0
        %v884 = vrot.slane %v883, 4
        %v885 = vadd.f32 %v883, %v884
        %v886 = vrot.slane %v885, 2
        %v887 = vadd.f32 %v885, %v886
        %v888 = vrot.slane %v887, 1
        %v889 = vadd.f32 %v887, %v888
        %v890 = vsel %vm875, %v869, 0.0
        %v891 = vrot.slane %v890, 4
        %v892 = vadd.f32 %v890, %v891
        %v893 = vrot.slane %v892, 2
        %v894 = vadd.f32 %v892, %v893
        %v895 = vrot.slane %v894, 1
        %v896 = vadd.f32 %v894, %v895
        %v897 = vsel %vm875, %v870, 0.0
        %v898 = vrot.slane %v897, 4
        %v899 = vadd.f32 %v897, %v898
        %v900 = vrot.slane %v899, 2
        %v901 = vadd.f32 %v899, %v900
        %v902 = vrot.slane %v901, 1
        %v903 = vadd.f32 %v901, %v902
        %v904 = vsel %vm875, %v871, 0.0
        %v905 = vrot.slane %v904, 4
        %v906 = vadd.f32 %v904, %v905
        %v907 = vrot.slane %v906, 2
        %v908 = vadd.f32 %v906, %v907
        %v909 = vrot.slane %v908, 1
        %v910 = vadd.f32 %v908, %v909
        %v911 = vsel %vm875, %v872, 0.0
        %v912 = vrot.slane %v911, 4
        %v913 = vadd.f32 %v911, %v912
        %v914 = vrot.slane %v913, 2
        %v915 = vadd.f32 %v913, %v914
        %v916 = vrot.slane %v915, 1
        %v917 = vadd.f32 %v915, %v916
        %v918 = vsel %vm875, %v873, 0.0
        %v919 = vrot.slane %v918, 4
        %v920 = vadd.f32 %v918, %v919
        %v921 = vrot.slane %v920, 2
        %v922 = vadd.f32 %v920, %v921
        %v923 = vrot.slane %v922, 1
        %v924 = vadd.f32 %v922, %v923
        %v925 = vsel %vm875, %v874, 0.0
        %v926 = vrot.slane %v925, 4
        %v927 = vadd.f32 %v925, %v926
        %v928 = vrot.slane %v927, 2
        %v929 = vadd.f32 %v927, %v928
        %v930 = vrot.slane %v929, 1
        %v931 = vadd.f32 %v929, %v930
        %v932 = vtanh.pop %v882
        %v933 = vtanh.pop %v889
        %v934 = vtanh.pop %v896
        %v935 = vtanh.pop %v903
        %v936 = vtanh.pop %v910
        %v937 = vtanh.pop %v917
        %v938 = vtanh.pop %v924
        %v939 = vtanh.pop %v931
        %v948 = vsel %vm782, %v933, %v932
        %v949 = vsel %vm784, %v934, %v948
        %v950 = vsel %vm786, %v935, %v949
        %v951 = vsel %vm788, %v936, %v950
        %v952 = vsel %vm790, %v937, %v951
        %v953 = vsel %vm792, %v938, %v952
        %v954 = vsel %vm794, %v939, %v953
        %v955 = vrot.slane %v361, 7
        %v956 = vrot.slane %v362, 6
        %v957 = vsel %vm782, %v956, %v955
        %v958 = vrot.slane %v363, 5
        %v959 = vsel %vm784, %v958, %v957
        %v960 = vrot.slane %v364, 4
        %v961 = vsel %vm786, %v960, %v959
        %v962 = vrot.slane %v365, 3
        %v963 = vsel %vm788, %v962, %v961
        %v964 = vrot.slane %v366, 2
        %v965 = vsel %vm790, %v964, %v963
        %v966 = vrot.slane %v367, 1
        %v967 = vsel %vm792, %v966, %v965
        %v968 = vsel %vm794, %v368, %v967
        %969 = vrot.lane.b32.xlu0 %v968, 64
        %v970 = vpop.permute.xlu0 %969
        %v971 = vld [vmem:[%s4] sm:$0xff]
        %v972 = vld [vmem:[%s4 + $0x8] sm:$0xff]
        %v973 = vld [vmem:[%s4 + $0x10] sm:$0xff]
        %v974 = vld [vmem:[%s4 + $0x18] sm:$0xff]
        %v975 = vld [vmem:[%s5] sm:$0x1]
        %v977 = vlaneseq
        %v978 = vshrl.u32 %v977, 7
        %v979 = vsub.s32 0, %v978
        %v980 = vrot.slane %v975, %v979
        %982 = vrot.lane.b32.xlu0 %v954, 64
        %v983 = vpop.permute.xlu0 %982
        %984 = vrot.lane.b32.xlu0 %v970, 64
        %v985 = vpop.permute.xlu0 %984
        %v986 = vsel %vm380, %v983, 0
        %v988 = vsel %vm380, %v985, 0
        %990 = vmatprep.subr.mxu0 0.0
        %991 = vmatpush1.msra.mxu0 0.0
        %992 = vmatprep.subr.mxu0 0.0
        %993 = vmatpush1.msra.mxu0 0.0
        %994 = vmatprep.subr.mxu0 0.0
        %995 = vmatpush1.msra.mxu0 0.0
        %996 = vmatprep.subr.mxu0 0.0
        %997 = vmatpush1.msra.mxu0 0.0
        %998 = vmatprep.subr.mxu0 0.0
        %999 = vmatpush1.msra.mxu0 0.0
        %1000 = vmatprep.subr.mxu0 0.0
        %1001 = vmatpush1.msra.mxu0 0.0
        %1002 = vmatprep.subr.mxu0 0.0
        %1003 = vmatpush1.msra.mxu0 0.0
        %1004 = vmatprep.subr.mxu0 0.0
        %1005 = vmatpush1.msra.mxu0 0.0
        %1006 = vmatprep.subr.mxu0 0.0
        %1007 = vmatpush1.msra.mxu0 0.0
        %1008 = vmatprep.subr.mxu0 0.0
        %1009 = vmatpush1.msra.mxu0 0.0
        %1010 = vmatprep.subr.mxu0 0.0
        %1011 = vmatpush1.msra.mxu0 0.0
        %1012 = vmatprep.subr.mxu0 0.0
        %1013 = vmatpush1.msra.mxu0 0.0
        %1014 = vmatprep.subr.mxu0 0.0
        %1015 = vmatpush1.msra.mxu0 %v974
        %1016 = vmatprep.subr.mxu0 0.0
        %1017 = vmatpush1.msra.mxu0 %v973
        %1018 = vmatprep.subr.mxu0 0.0
        %1019 = vmatpush1.msra.mxu0 %v972
        %1020 = vmatprep.subr.mxu0 0.0
        %1021 = vmatpush1.msra.mxu0 %v971
        %1022 = vmatprep.subr.mxu0 0.0
        %1023 = vmatpush2.msra.mxu0 0.0
        %1024 = vmatprep.subr.mxu0 0.0
        %1025 = vmatpush2.msra.mxu0 0.0
        %1026 = vmatprep.subr.mxu0 0.0
        %1027 = vmatpush2.msra.mxu0 0.0
        %1028 = vmatprep.subr.mxu0 0.0
        %1029 = vmatpush2.msra.mxu0 0.0
        %1030 = vmatprep.subr.mxu0 0.0
        %1031 = vmatpush2.msra.mxu0 0.0
        %1032 = vmatprep.subr.mxu0 0.0
        %1033 = vmatpush2.msra.mxu0 0.0
        %1034 = vmatprep.subr.mxu0 0.0
        %1035 = vmatpush2.msra.mxu0 0.0
        %1036 = vmatprep.subr.mxu0 0.0
        %1037 = vmatpush2.msra.mxu0 0.0
        %1038 = vmatprep.subr.mxu0 0.0
        %1039 = vmatpush2.msra.mxu0 0.0
        %1040 = vmatprep.subr.mxu0 0.0
        %1041 = vmatpush2.msra.mxu0 0.0
        %1042 = vmatprep.subr.mxu0 0.0
        %1043 = vmatpush2.msra.mxu0 0.0
        %1044 = vmatprep.subr.mxu0 0.0
        %1045 = vmatpush2.msra.mxu0 0.0
        %1046 = vmatprep.subr.mxu0 0.0
        %1047 = vmatpush2.msra.mxu0 0.0
        %1048 = vmatprep.subr.mxu0 0.0
        %1049 = vmatpush2.msra.mxu0 0.0
        %1050 = vmatprep.subr.mxu0 0.0
        %1051 = vmatpush2.msra.mxu0 0.0
        %1052 = vmatprep.subr.mxu0 0.0
        %1053 = vmatpush2.msra.mxu0 0.0
        %1054 = vmatprep.mubr.f32.mxu0 0.0
        %1055 = vmatmul.mubr.f32.gmra.mxu0 %v986
        %v1056 = vpop.f32.mrf.mxu0
        %v1057 = vadd.f32 %v980, %v1056
        %v1058 = vpop.f32.mrf.mxu0
        %1059 = vmatprep.mubr.f32.mxu0 0.0
        %1060 = vmatmul.mubr.f32.gmra.mxu0 %v988
        %v1061 = vpop.f32.mrf.mxu0
        %v1062 = vadd.f32 %v980, %v1061
        %v1063 = vpop.f32.mrf.mxu0
        %1064 = vdwg.mxu0
        %v1065 = vmax.f32 %v1057, 0.0
        %v1066 = vmax.f32 %v1062, 0.0
        %v1067 = vld [vmem:[%s6] sm:$0xff]
        %v1068 = vld [vmem:[%s6 + $0x8] sm:$0xff]
        %v1069 = vld [vmem:[%s7] sm:$0x1]
        %v1071 = vlaneseq
        %v1072 = vshrl.u32 %v1071, 7
        %v1073 = vsub.s32 0, %v1072
        %v1074 = vrot.slane %v1069, %v1073
        %vm1076 = vcmask 130048
        %v1078 = vsel %vm1076, %v1065, 0
        %v1081 = vsel %vm1076, %v1066, 0
        %1083 = vmatprep.subr.mxu0 0.0
        %1084 = vmatpush1.msra.mxu0 0.0
        %1085 = vmatprep.subr.mxu0 0.0
        %1086 = vmatpush1.msra.mxu0 0.0
        %1087 = vmatprep.subr.mxu0 0.0
        %1088 = vmatpush1.msra.mxu0 0.0
        %1089 = vmatprep.subr.mxu0 0.0
        %1090 = vmatpush1.msra.mxu0 0.0
        %1091 = vmatprep.subr.mxu0 0.0
        %1092 = vmatpush1.msra.mxu0 0.0
        %1093 = vmatprep.subr.mxu0 0.0
        %1094 = vmatpush1.msra.mxu0 0.0
        %1095 = vmatprep.subr.mxu0 0.0
        %1096 = vmatpush1.msra.mxu0 0.0
        %1097 = vmatprep.subr.mxu0 0.0
        %1098 = vmatpush1.msra.mxu0 0.0
        %1099 = vmatprep.subr.mxu0 0.0
        %1100 = vmatpush1.msra.mxu0 0.0
        %1101 = vmatprep.subr.mxu0 0.0
        %1102 = vmatpush1.msra.mxu0 0.0
        %1103 = vmatprep.subr.mxu0 0.0
        %1104 = vmatpush1.msra.mxu0 0.0
        %1105 = vmatprep.subr.mxu0 0.0
        %1106 = vmatpush1.msra.mxu0 0.0
        %1107 = vmatprep.subr.mxu0 0.0
        %1108 = vmatpush1.msra.mxu0 0.0
        %1109 = vmatprep.subr.mxu0 0.0
        %1110 = vmatpush1.msra.mxu0 0.0
        %1111 = vmatprep.subr.mxu0 0.0
        %1112 = vmatpush1.msra.mxu0 %v1068
        %1113 = vmatprep.subr.mxu0 0.0
        %1114 = vmatpush1.msra.mxu0 %v1067
        %1115 = vmatprep.subr.mxu0 0.0
        %1116 = vmatpush2.msra.mxu0 0.0
        %1117 = vmatprep.subr.mxu0 0.0
        %1118 = vmatpush2.msra.mxu0 0.0
        %1119 = vmatprep.subr.mxu0 0.0
        %1120 = vmatpush2.msra.mxu0 0.0
        %1121 = vmatprep.subr.mxu0 0.0
        %1122 = vmatpush2.msra.mxu0 0.0
        %1123 = vmatprep.subr.mxu0 0.0
        %1124 = vmatpush2.msra.mxu0 0.0
        %1125 = vmatprep.subr.mxu0 0.0
        %1126 = vmatpush2.msra.mxu0 0.0
        %1127 = vmatprep.subr.mxu0 0.0
        %1128 = vmatpush2.msra.mxu0 0.0
        %1129 = vmatprep.subr.mxu0 0.0
        %1130 = vmatpush2.msra.mxu0 0.0
        %1131 = vmatprep.subr.mxu0 0.0
        %1132 = vmatpush2.msra.mxu0 0.0
        %1133 = vmatprep.subr.mxu0 0.0
        %1134 = vmatpush2.msra.mxu0 0.0
        %1135 = vmatprep.subr.mxu0 0.0
        %1136 = vmatpush2.msra.mxu0 0.0
        %1137 = vmatprep.subr.mxu0 0.0
        %1138 = vmatpush2.msra.mxu0 0.0
        %1139 = vmatprep.subr.mxu0 0.0
        %1140 = vmatpush2.msra.mxu0 0.0
        %1141 = vmatprep.subr.mxu0 0.0
        %1142 = vmatpush2.msra.mxu0 0.0
        %1143 = vmatprep.subr.mxu0 0.0
        %1144 = vmatpush2.msra.mxu0 0.0
        %1145 = vmatprep.subr.mxu0 0.0
        %1146 = vmatpush2.msra.mxu0 0.0
        %1147 = vmatprep.mubr.f32.mxu0 0.0
        %1148 = vmatmul.mubr.f32.gmra.mxu0 %v1078
        %v1149 = vpop.f32.mrf.mxu0
        %v1150 = vadd.f32 %v1074, %v1149
        %v1151 = vpop.f32.mrf.mxu0
        %1152 = vmatprep.mubr.f32.mxu0 0.0
        %1153 = vmatmul.mubr.f32.gmra.mxu0 %v1081
        %v1154 = vpop.f32.mrf.mxu0
        %v1155 = vadd.f32 %v1074, %v1154
        %v1156 = vpop.f32.mrf.mxu0
        %1157 = vdwg.mxu0
        %v1158 = vmax.f32 %v1150, 0.0
        %v1159 = vmax.f32 %v1155, 0.0
        %v1160 = vld [vmem:[%s8] sm:$0xff]
        %v1161 = vld [vmem:[%s8 + $0x8] sm:$0xff]
        %v1162 = vld [vmem:[%s9] sm:$0x3]
        %v1164 = vlaneseq
        %v1165 = vshrl.u32 %v1164, 7
        %v1166 = vsub.s32 0, %v1165
        %v1167 = vrot.slane %v1162, %v1166
        %v1168 = vlaneseq
        %v1169 = vshrl.u32 %v1168, 7
        %v1170 = vsub.s32 1, %v1169
        %v1171 = vrot.slane %v1162, %v1170
        %v1175 = vsel %vm798, %v1158, 0
        %v1178 = vsel %vm798, %v1159, 0
        %1180 = vmatprep.subr.mxu0 0.0
        %1181 = vmatpush1.msra.mxu0 0.0
        %1182 = vmatprep.subr.mxu0 0.0
        %1183 = vmatpush1.msra.mxu0 0.0
        %1184 = vmatprep.subr.mxu0 0.0
        %1185 = vmatpush1.msra.mxu0 0.0
        %1186 = vmatprep.subr.mxu0 0.0
        %1187 = vmatpush1.msra.mxu0 0.0
        %1188 = vmatprep.subr.mxu0 0.0
        %1189 = vmatpush1.msra.mxu0 0.0
        %1190 = vmatprep.subr.mxu0 0.0
        %1191 = vmatpush1.msra.mxu0 0.0
        %1192 = vmatprep.subr.mxu0 0.0
        %1193 = vmatpush1.msra.mxu0 0.0
        %1194 = vmatprep.subr.mxu0 0.0
        %1195 = vmatpush1.msra.mxu0 0.0
        %1196 = vmatprep.subr.mxu0 0.0
        %1197 = vmatpush1.msra.mxu0 0.0
        %1198 = vmatprep.subr.mxu0 0.0
        %1199 = vmatpush1.msra.mxu0 0.0
        %1200 = vmatprep.subr.mxu0 0.0
        %1201 = vmatpush1.msra.mxu0 0.0
        %1202 = vmatprep.subr.mxu0 0.0
        %1203 = vmatpush1.msra.mxu0 0.0
        %1204 = vmatprep.subr.mxu0 0.0
        %1205 = vmatpush1.msra.mxu0 0.0
        %1206 = vmatprep.subr.mxu0 0.0
        %1207 = vmatpush1.msra.mxu0 0.0
        %1208 = vmatprep.subr.mxu0 0.0
        %1209 = vmatpush1.msra.mxu0 0.0
        %1210 = vmatprep.subr.mxu0 %v1161
        %1211 = vmatpush1.msra.mxu0 %v1160
        %1212 = vmatprep.subr.mxu0 0.0
        %1213 = vmatpush2.msra.mxu0 0.0
        %1214 = vmatprep.subr.mxu0 0.0
        %1215 = vmatpush2.msra.mxu0 0.0
        %1216 = vmatprep.subr.mxu0 0.0
        %1217 = vmatpush2.msra.mxu0 0.0
        %1218 = vmatprep.subr.mxu0 0.0
        %1219 = vmatpush2.msra.mxu0 0.0
        %1220 = vmatprep.subr.mxu0 0.0
        %1221 = vmatpush2.msra.mxu0 0.0
        %1222 = vmatprep.subr.mxu0 0.0
        %1223 = vmatpush2.msra.mxu0 0.0
        %1224 = vmatprep.subr.mxu0 0.0
        %1225 = vmatpush2.msra.mxu0 0.0
        %1226 = vmatprep.subr.mxu0 0.0
        %1227 = vmatpush2.msra.mxu0 0.0
        %1228 = vmatprep.subr.mxu0 0.0
        %1229 = vmatpush2.msra.mxu0 0.0
        %1230 = vmatprep.subr.mxu0 0.0
        %1231 = vmatpush2.msra.mxu0 0.0
        %1232 = vmatprep.subr.mxu0 0.0
        %1233 = vmatpush2.msra.mxu0 0.0
        %1234 = vmatprep.subr.mxu0 0.0
        %1235 = vmatpush2.msra.mxu0 0.0
        %1236 = vmatprep.subr.mxu0 0.0
        %1237 = vmatpush2.msra.mxu0 0.0
        %1238 = vmatprep.subr.mxu0 0.0
        %1239 = vmatpush2.msra.mxu0 0.0
        %1240 = vmatprep.subr.mxu0 0.0
        %1241 = vmatpush2.msra.mxu0 0.0
        %1242 = vmatprep.subr.mxu0 0.0
        %1243 = vmatpush2.msra.mxu0 0.0
        %1244 = vmatprep.mubr.f32.mxu0 0.0
        %1245 = vmatmul.mubr.f32.gmra.mxu0 %v1175
        %v1246 = vpop.f32.mrf.mxu0
        %v1247 = vadd.f32 %v1167, %v1246
        %v1248 = vpop.f32.mrf.mxu0
        %v1249 = vadd.f32 %v1171, %v1248
        %1250 = vmatprep.mubr.f32.mxu0 0.0
        %1251 = vmatmul.mubr.f32.gmra.mxu0 %v1178
        %v1252 = vpop.f32.mrf.mxu0
        %v1253 = vadd.f32 %v1167, %v1252
        %v1254 = vpop.f32.mrf.mxu0
        %v1255 = vadd.f32 %v1171, %v1254
        %1256 = vdwg.mxu0
        %v1257 = vmax.f32 %v1247, 0.0
        %v1258 = vmax.f32 %v1249, 0.0
        %v1259 = vmax.f32 %v1253, 0.0
        %v1260 = vmax.f32 %v1255, 0.0
        %v1263 = vcombine.low %v1257, %v1258
        %v1264 = vcombine.high %v1257, %v1258
        %v1266 = vunpack.c.l.s4 1966171168
        %v1267 = vunpack.c.0.s8 %v1266
        %v1268 = vlaneseq
        %v1269 = vshrl.u32 %v1268, 7
        %v1270 = vsub.s32 %v1267, %v1269
        %v1271 = vrot.slane %v1263, %v1270
        %v1273 = vunpack.c.l.s4 1966171168
        %v1274 = vunpack.c.0.s8 %v1273
        %v1275 = vlaneseq
        %v1276 = vshrl.u32 %v1275, 7
        %v1277 = vsub.s32 %v1274, %v1276
        %v1278 = vrot.slane %v1264, %v1277
        %v1279 = vcombine.high %v1271, %v1271
        %v1280 = vcombine.high %v1278, %v1278
        %v1282 = vunpack.c.l.s4 1966171168
        %v1283 = vunpack.c.0.s8 %v1282
        %v1284 = vlaneseq
        %v1285 = vshrl.u32 %v1284, 7
        %v1286 = vsub.s32 %v1283, %v1285
        %v1287 = vrot.slane %v1271, %v1286
        %v1289 = vunpack.c.l.s4 1966171168
        %v1290 = vunpack.c.0.s8 %v1289
        %v1291 = vlaneseq
        %v1292 = vshrl.u32 %v1291, 7
        %v1293 = vsub.s32 %v1290, %v1292
        %v1294 = vrot.slane %v1278, %v1293
        %v1296 = vunpack.c.l.s4 1966171168
        %v1297 = vunpack.c.0.s8 %v1296
        %v1298 = vlaneseq
        %v1299 = vshrl.u32 %v1298, 7
        %v1300 = vsub.s32 %v1297, %v1299
        %v1301 = vrot.slane %v1279, %v1300
        %v1303 = vunpack.c.l.s4 1966171168
        %v1304 = vunpack.c.0.s8 %v1303
        %v1305 = vlaneseq
        %v1306 = vshrl.u32 %v1305, 7
        %v1307 = vsub.s32 %v1304, %v1306
        %v1308 = vrot.slane %v1280, %v1307
        %v1309 = vcombine.high %v1287, %v1287
        %v1310 = vcombine.high %v1294, %v1294
        %v1311 = vcombine.high %v1301, %v1301
        %v1312 = vcombine.high %v1308, %v1308
        %v1321 = vlaneseq
        %vm1322 = vcmp.ge.s32.totalorder %v1321, 0
        %vm1323 = vcmp.lt.s32.totalorder %v1321, 200
        %vm1324 = vmand %vm1322, %vm1323
        %1325 = vst.msk [vmem:[%s357] ss:$2 sm:$0x3] %vm1324, %v1287
        %s1326 = scalar_lea.vmem %s357, 4 [#allocation7]
        %1327 = vst.msk [vmem:[%s1326] ss:$2 sm:$0x3] %vm1324, %v1301
        %s1328 = scalar_lea.vmem %s357, 8 [#allocation7]
        %1329 = vst.msk [vmem:[%s1328] ss:$2 sm:$0x3] %vm1324, %v1309
        %s1330 = scalar_lea.vmem %s357, 12 [#allocation7]
        %1331 = vst.msk [vmem:[%s1330] ss:$2 sm:$0x3] %vm1324, %v1311
        %s1332 = scalar_lea.vmem %s357, 16 [#allocation7]
        %1333 = vst.msk [vmem:[%s1332] ss:$2 sm:$0x3] %vm1324, %v1294
        %s1334 = scalar_lea.vmem %s357, 20 [#allocation7]
        %1335 = vst.msk [vmem:[%s1334] ss:$2 sm:$0x3] %vm1324, %v1308
        %s1336 = scalar_lea.vmem %s357, 24 [#allocation7]
        %1337 = vst.msk [vmem:[%s1336] ss:$2 sm:$0x3] %vm1324, %v1310
        %s1338 = scalar_lea.vmem %s357, 28 [#allocation7]
        %1339 = vst.msk [vmem:[%s1338] ss:$2 sm:$0x3] %vm1324, %v1312
        %v1342 = vcombine.low %v1259, %v1260
        %v1343 = vcombine.high %v1259, %v1260
        %v1345 = vunpack.c.l.s4 1966171168
        %v1346 = vunpack.c.0.s8 %v1345
        %v1347 = vlaneseq
        %v1348 = vshrl.u32 %v1347, 7
        %v1349 = vsub.s32 %v1346, %v1348
        %v1350 = vrot.slane %v1342, %v1349
        %v1352 = vunpack.c.l.s4 1966171168
        %v1353 = vunpack.c.0.s8 %v1352
        %v1354 = vlaneseq
        %v1355 = vshrl.u32 %v1354, 7
        %v1356 = vsub.s32 %v1353, %v1355
        %v1357 = vrot.slane %v1343, %v1356
        %v1358 = vcombine.high %v1350, %v1350
        %v1359 = vcombine.high %v1357, %v1357
        %v1361 = vunpack.c.l.s4 1966171168
        %v1362 = vunpack.c.0.s8 %v1361
        %v1363 = vlaneseq
        %v1364 = vshrl.u32 %v1363, 7
        %v1365 = vsub.s32 %v1362, %v1364
        %v1366 = vrot.slane %v1350, %v1365
        %v1368 = vunpack.c.l.s4 1966171168
        %v1369 = vunpack.c.0.s8 %v1368
        %v1370 = vlaneseq
        %v1371 = vshrl.u32 %v1370, 7
        %v1372 = vsub.s32 %v1369, %v1371
        %v1373 = vrot.slane %v1357, %v1372
        %v1375 = vunpack.c.l.s4 1966171168
        %v1376 = vunpack.c.0.s8 %v1375
        %v1377 = vlaneseq
        %v1378 = vshrl.u32 %v1377, 7
        %v1379 = vsub.s32 %v1376, %v1378
        %v1380 = vrot.slane %v1358, %v1379
        %v1382 = vunpack.c.l.s4 1966171168
        %v1383 = vunpack.c.0.s8 %v1382
        %v1384 = vlaneseq
        %v1385 = vshrl.u32 %v1384, 7
        %v1386 = vsub.s32 %v1383, %v1385
        %v1387 = vrot.slane %v1359, %v1386
        %v1388 = vcombine.high %v1366, %v1366
        %v1389 = vcombine.high %v1373, %v1373
        %v1390 = vcombine.high %v1380, %v1380
        %v1391 = vcombine.high %v1387, %v1387
        %s1400 = scalar_lea.vmem %s357, 1 [#allocation7]
        %1401 = vst.msk [vmem:[%s1400] ss:$2 sm:$0x3] %vm1324, %v1366
        %s1402 = scalar_lea.vmem %s357, 5 [#allocation7]
        %1403 = vst.msk [vmem:[%s1402] ss:$2 sm:$0x3] %vm1324, %v1380
        %s1404 = scalar_lea.vmem %s357, 9 [#allocation7]
        %1405 = vst.msk [vmem:[%s1404] ss:$2 sm:$0x3] %vm1324, %v1388
        %s1406 = scalar_lea.vmem %s357, 13 [#allocation7]
        %1407 = vst.msk [vmem:[%s1406] ss:$2 sm:$0x3] %vm1324, %v1390
        %s1408 = scalar_lea.vmem %s357, 17 [#allocation7]
        %1409 = vst.msk [vmem:[%s1408] ss:$2 sm:$0x3] %vm1324, %v1373
        %s1410 = scalar_lea.vmem %s357, 21 [#allocation7]
        %1411 = vst.msk [vmem:[%s1410] ss:$2 sm:$0x3] %vm1324, %v1387
        %s1412 = scalar_lea.vmem %s357, 25 [#allocation7]
        %1413 = vst.msk [vmem:[%s1412] ss:$2 sm:$0x3] %vm1324, %v1389
        %s1414 = scalar_lea.vmem %s357, 29 [#allocation7]
        %1415 = vst.msk [vmem:[%s1414] ss:$2 sm:$0x3] %vm1324, %v1391
        %s1416 = sand.u32 %s235, 1
        %s1417 = scalar_lea.sflag [#allocation6], %s1416
        %s1418 = sand.u32 %s235, 1
        %s1419 = smul.addr %s1418, 32
        %s1420 = scalar_lea.vmem [#allocation7], %s1419
        // Predicated region
        $region61: #{tpu_custom_call.1} parent=55 // pred_check
          %p1421 = pneg %p245
        $region62: #{tpu_custom_call.1} parent=55 // pred_check_branch
          %1423 = sbr.rel (%p1421) target = $region64
        $region63: #{tpu_custom_call.1} parent=55 // pred_region
          %s1424 = smul.u32 8, %s33
          %s1426 = ssub.s32 512, 512
          %1427 = vsyncadd %s1417, %s1426
          %s1428 = smul.addr %s1424, 2
          %s1429 = smul.addr %s1428, 32
          %s1430 = scalar_lea.hbm %s10, %s1429
          %s1431 = sshll.u32 %s1420, 4
          %s1432 = int_to_ptr.vmem [resolvable:$true] %s1431
          %1437 = dma.vmem_to_hbm [thread:$0]  %s1432, 512, %s1430, %s1417, 64, 64, 4
        $region64: #{tpu_custom_call.1} parent=55 // pred_fallthru
          _
      $region56: #{tpu_custom_call.1} parent=5 // pred_fallthru
        _
      %p1438 = scmp.le.s32.totalorder 2, %s28
      // Predicated region
      $region65: #{tpu_custom_call.1} parent=5 // pred_check
        %p1439 = pneg %p1438
      $region66: #{tpu_custom_call.1} parent=5 // pred_check_branch
        %1441 = sbr.rel (%p1439) target = $region68
      $region67: #{tpu_custom_call.1} parent=5 // pred_region
        %s1442 = ssub.s32 %s28, 2
        // Predicated region
        $region69: #{tpu_custom_call.1} parent=67 // pred_check
          %p1443 = pneg %p251
        $region70: #{tpu_custom_call.1} parent=67 // pred_check_branch
          %1445 = sbr.rel (%p1443) target = $region72
        $region71: #{tpu_custom_call.1} parent=67 // pred_region
          %s1446 = sand.u32 %s236, 1
          %s1447 = scalar_lea.sflag [#allocation6], %s1446
          %s1448 = sand.u32 %s236, 1
          %s1449 = smul.addr %s1448, 32
          %s1450 = scalar_lea.vmem [#allocation7], %s1449
          %1451 = dma.done %s1447, 512
        $region72: #{tpu_custom_call.1} parent=67 // pred_fallthru
          _
      $region68: #{tpu_custom_call.1} parent=5 // pred_fallthru
        _
    $region6: #{tpu_custom_call.1} parent=1 // loop_footer
      %s32 = sadd.s32 1, %s28
    $region7: #{tpu_custom_call.1} parent=1 // loop_footer_branch
      %27 = sbr.rel target = $region3
    $region8: #{tpu_custom_call.1} parent=1 // loop_exit
      _
    %1452 = vsyncpa [#allocation5], 1
    %s1453 = scalar_lea.sflag [#allocation5], 1
    %1454 = vsyncpa %s1453, 1
    %1455 = vsyncpa [#allocation6], 1
    %s1456 = scalar_lea.sflag [#allocation6], 1
    %1457 = vsyncpa %s1456, 1

</llo_original>
